<compile_context>
chip_gen: v7x
topology: tpu7x:2x2x1
jax: 0.10.0
libtpu: 0.0.40
codegen_flags: <defaults>
</compile_context>

<pallas_src>
import functools

import jax
import jax.numpy as jnp
from jax.experimental import pallas as pl
from jax.experimental.pallas import tpu as pltpu


def _round_up(x, m):
    return ((x + m - 1) // m) * m


# ---------------- Pallas kernels ----------------

def _make_stats_kernel(relu, tm, rows_valid):
    """Pass 1: y = x @ w + b (+ReLU); per-tile partial column sum / sum-of-squares."""

    def kernel(x_ref, w_ref, b_ref, sum_ref, sq_ref):
        y = jnp.dot(x_ref[...], w_ref[...], preferred_element_type=jnp.float32)
        y = y + b_ref[...]                       # bias BEFORE the activation
        if relu:
            y = jnp.maximum(y, 0.0)
        if rows_valid is not None:               # zero padded rows out of the stats
            row = (pl.program_id(0) * tm
                   + jax.lax.broadcasted_iota(jnp.int32, (tm, 1), 0))
            y = jnp.where(row < rows_valid, y, 0.0)
        yg = y.reshape(tm // 8, 8, y.shape[-1])  # sublane-group partials (VPU adds only)
        sum_ref[...] = jnp.sum(yg, axis=0)
        sq_ref[...] = jnp.sum(yg * yg, axis=0)

    return kernel


def _make_apply_kernel(relu):
    """Pass 2: y = x @ w + b (+ReLU); out = y*scale + shift (scale=1, shift=0 if bn=False)."""

    def kernel(x_ref, w_ref, b_ref, scale_ref, shift_ref, o_ref):
        y = jnp.dot(x_ref[...], w_ref[...], preferred_element_type=jnp.float32)
        y = y + b_ref[...]
        if relu:
            y = jnp.maximum(y, 0.0)
        o_ref[...] = y * scale_ref[...] + shift_ref[...]

    return kernel


# ---------------- wrapper ----------------

def _pick_tm(cin, cpad):
    """Largest row tile whose double-buffered working set stays well under the
    scoped-VMEM default on every generation (v5e 16 MiB, v6e/v7x 32 MiB)."""
    budget = 12 * 1024 * 1024
    for tm in (1024, 512, 256, 128):
        need = 2 * 4 * (tm * cin + tm * cpad + cin * cpad) + 64 * cpad * 4
        if need <= budget:
            return tm
    return 128


def upsampling_layer_forward(x_nchw, w, b, gamma, beta, *, eps=1e-5,
                             activation="none", bn=True):
    """UpsamplingLayer forward. x_nchw: (N, Cin, H, W) -> (N, Cout, 2H, 2W)."""
    N, Cin, H, W = x_nchw.shape
    Cout = w.shape[1]
    relu = activation == "ReLU"

    # ---- flatten input to (rows, channels); channels on lanes ----
    M = N * H * W
    x_flat = jnp.transpose(x_nchw, (0, 2, 3, 1)).reshape(M, Cin).astype(jnp.float32)

    # ---- column padding: Cpad = 4*Cout_pad multiple of 128 (lane-dense stores) ----
    Cout_pad = _round_up(Cout, 32)
    Cpad = 4 * Cout_pad
    w_p = jnp.pad(w.astype(jnp.float32),
                  ((0, 0), (0, Cout_pad - Cout), (0, 0), (0, 0)))
    w_flat = jnp.transpose(w_p, (0, 2, 3, 1)).reshape(Cin, Cpad)   # cols = (a, b, co)
    b_pad = jnp.pad(b.astype(jnp.float32), (0, Cout_pad - Cout))
    b_flat = jnp.tile(b_pad, 4).reshape(1, Cpad)

    # bf16 matmul inputs only when the contraction is large enough to matter
    if Cin >= 128:
        x_flat = x_flat.astype(jnp.bfloat16)
        w_flat = w_flat.astype(jnp.bfloat16)

    # ---- row tiling: VMEM-budgeted tile + zero row-padding for odd sizes ----
    TM = _pick_tm(Cin, Cpad)
    M_pad = _round_up(M, 8)
    if M_pad <= TM:
        TM = M_pad
    else:
        M_pad = _round_up(M, TM)
    if M_pad != M:
        x_flat = jnp.pad(x_flat, ((0, M_pad - M), (0, 0)))
    num_tiles = M_pad // TM

    x_spec = pl.BlockSpec((TM, Cin), lambda i: (i, 0))
    w_spec = pl.BlockSpec((Cin, Cpad), lambda i: (0, 0))
    col_spec = pl.BlockSpec((1, Cpad), lambda i: (0, 0))
    out_spec = pl.BlockSpec((TM, Cpad), lambda i: (i, 0))
    parallel = pltpu.CompilerParams(dimension_semantics=("parallel",))

    if bn:
        # ---- pass 1: stats only; the 4x-upsampled tensor never hits HBM here ----
        part_spec = pl.BlockSpec((8, Cpad), lambda i: (i, 0))
        rows_valid = M if M_pad != M else None
        sum_part, sq_part = pl.pallas_call(
            _make_stats_kernel(relu, TM, rows_valid),
            out_shape=(jax.ShapeDtypeStruct((num_tiles * 8, Cpad), jnp.float32),
                       jax.ShapeDtypeStruct((num_tiles * 8, Cpad), jnp.float32)),
            grid=(num_tiles,),
            in_specs=[x_spec, w_spec, col_spec],
            out_specs=(part_spec, part_spec),
            compiler_params=parallel,
        )(x_flat, w_flat, b_flat)

        # ---- per-channel stats (tiny XLA): fold tiles, sublanes and the 4 (a,b) groups
        M2 = N * (2 * H) * (2 * W)                          # real count per channel
        sum_c = jnp.sum(sum_part, axis=0).reshape(4, Cout_pad).sum(axis=0)
        sq_c = jnp.sum(sq_part, axis=0).reshape(4, Cout_pad).sum(axis=0)
        mean = sum_c / M2
        var = jnp.maximum(sq_c / M2 - mean * mean, 0.0)     # biased variance (BN norm)
        inv = jax.lax.rsqrt(var + eps)
        gamma_pad = jnp.pad(gamma.astype(jnp.float32), (0, Cout_pad - Cout),
                            constant_values=1.0)
        beta_pad = jnp.pad(beta.astype(jnp.float32), (0, Cout_pad - Cout))
        scale_c = gamma_pad * inv
        shift_c = beta_pad - mean * scale_c
        scale = jnp.tile(scale_c, 4).reshape(1, Cpad)       # tiled to (a, b, co) order
        shift = jnp.tile(shift_c, 4).reshape(1, Cpad)
    else:
        scale = jnp.ones((1, Cpad), jnp.float32)
        shift = jnp.zeros((1, Cpad), jnp.float32)

    # ---- pass 2: recompute matmul, fuse bias/ReLU/BN-affine, write the big tensor ONCE
    out_flat = pl.pallas_call(
        _make_apply_kernel(relu),
        out_shape=jax.ShapeDtypeStruct((M_pad, Cpad), jnp.float32),
        grid=(num_tiles,),
        in_specs=[x_spec, w_spec, col_spec, col_spec, col_spec],
        out_specs=out_spec,
        compiler_params=parallel,
    )(x_flat, w_flat, b_flat, scale, shift)

    # ---- epilogue: ONE composed transpose = sub-pixel scatter + channel de-pad + NCHW.
    # TODO(synk): emitting NCHW straight from the kernel would drop this last XLA copy,
    # but needs an in-kernel channels-to-sublanes transpose and (for small W) narrow
    # stores; it is left to XLA as a single fused copy instead.
    out6 = out_flat[:M] if M_pad != M else out_flat
    out6 = out6.reshape(N, H, W, 2, 2, Cout_pad)
    if Cout_pad != Cout:
        out6 = out6[..., :Cout]
    out = jnp.transpose(out6, (0, 5, 1, 3, 2, 4)).reshape(N, Cout, 2 * H, 2 * W)
    return out


# ---------------- pure-JAX reference (for correctness check) ----------------

def _reference(x, w, b, gamma, beta, eps=1e-5, activation="none", bn=True):
    N, Cin, H, W = x.shape
    Cout = w.shape[1]
    y = jnp.einsum("ncij,cdab->ndiajb", x, w).reshape(N, Cout, 2 * H, 2 * W)
    y = y + b[None, :, None, None]
    if activation == "ReLU":
        y = jnp.maximum(y, 0.0)
    if not bn:
        return y
    mean = jnp.mean(y, axis=(0, 2, 3), keepdims=True)
    var = jnp.mean((y - mean) ** 2, axis=(0, 2, 3), keepdims=True)
    yhat = (y - mean) * jax.lax.rsqrt(var + eps)
    return yhat * gamma[None, :, None, None] + beta[None, :, None, None]


if __name__ == "__main__":
    key = jax.random.PRNGKey(0)
    kx, kw, kb, kg, kbe = jax.random.split(key, 5)

    N, in_channel, out_channel, H, W = 2, 4, 8, 16, 16
    x = jax.random.normal(kx, (N, in_channel, H, W), dtype=jnp.float32)

    # synthetic parameters (ConvTranspose2d weight layout: (Cin, Cout, 2, 2))
    w = 0.1 * jax.random.normal(kw, (in_channel, out_channel, 2, 2), dtype=jnp.float32)
    b = 0.1 * jax.random.normal(kb, (out_channel,), dtype=jnp.float32)
    gamma = 1.0 + 0.1 * jax.random.normal(kg, (out_channel,), dtype=jnp.float32)
    beta = 0.05 * jax.random.normal(kbe, (out_channel,), dtype=jnp.float32)

    # exercise the default path, the ReLU+BN path (bias-before-ReLU fix), and bn=False
    for act, use_bn in (("none", True), ("ReLU", True), ("none", False)):
        fwd = jax.jit(functools.partial(upsampling_layer_forward,
                                        activation=act, bn=use_bn))
        out = jax.block_until_ready(fwd(x, w, b, gamma, beta))
        ref = _reference(x, w, b, gamma, beta, activation=act, bn=use_bn)
        assert out.shape == (N, out_channel, 2 * H, 2 * W), out.shape
        max_err = float(jnp.max(jnp.abs(out - ref)))
        assert jnp.allclose(out, ref, rtol=1e-4, atol=1e-4), (act, use_bn, max_err)

    print("KERNEL_OK")
</pallas_src>

<mosaic_0001>
module attributes {stable_mosaic.version = 11 : i64} {
  func.func @kernel(%arg0: i32, %arg1: memref<512x4xf32, #tpu.memory_space<vmem>>, %arg2: memref<4x128xf32, #tpu.memory_space<vmem>>, %arg3: memref<1x128xf32, #tpu.memory_space<vmem>>, %arg4: memref<8x128xf32, #tpu.memory_space<vmem>>, %arg5: memref<8x128xf32, #tpu.memory_space<vmem>>) attributes {dimension_semantics = [#tpu.dimension_semantics<parallel>], iteration_bounds = array<i64: 1>, scalar_prefetch = 0 : i64, scratch_operands = 0 : i64, tpu.core_type = #tpu.core_type<tc>, window_params = [{transform_indices = @transform_0, window_bounds = array<i64: 512, 4>}, {pipeline_mode = #tpu.pipeline_mode<synchronous>, transform_indices = @transform_1, window_bounds = array<i64: 4, 128>}, {pipeline_mode = #tpu.pipeline_mode<synchronous>, transform_indices = @transform_2, window_bounds = array<i64: 1, 128>}, {transform_indices = @transform_3, window_bounds = array<i64: 8, 128>}, {transform_indices = @transform_4, window_bounds = array<i64: 8, 128>}]} {
    %c0 = arith.constant 0 : index
    %c0_0 = arith.constant 0 : index
    %0 = vector.load %arg1[%c0, %c0_0] : memref<512x4xf32, #tpu.memory_space<vmem>>, vector<512x4xf32>
    %c0_1 = arith.constant 0 : index
    %c0_2 = arith.constant 0 : index
    %1 = vector.load %arg2[%c0_1, %c0_2] : memref<4x128xf32, #tpu.memory_space<vmem>>, vector<4x128xf32>
    %cst = arith.constant dense<0.000000e+00> : vector<512x128xf32>
    %2 = tpu.matmul %0, %1, %cst {dimension_numbers = #tpu.dot_dimension_numbers<[1], [0], [0], [1], [0, 0, 1, 1], [], []>} : vector<512x4xf32>, vector<4x128xf32>, vector<512x128xf32> -> vector<512x128xf32>
    %c0_3 = arith.constant 0 : index
    %c0_4 = arith.constant 0 : index
    %3 = vector.load %arg3[%c0_3, %c0_4] : memref<1x128xf32, #tpu.memory_space<vmem>>, vector<1x128xf32>
    %4 = vector.broadcast %3 : vector<1x128xf32> to vector<512x128xf32>
    %5 = arith.addf %2, %4 : vector<512x128xf32>
    %6 = vector.shape_cast %5 : vector<512x128xf32> to vector<64x8x128xf32>
    %cst_5 = arith.constant dense<0.000000e+00> : vector<8x128xf32>
    %7 = vector.multi_reduction <add>, %6, %cst_5 [0] : vector<64x8x128xf32> to vector<8x128xf32>
    %c0_6 = arith.constant 0 : index
    %c0_7 = arith.constant 0 : index
    %8 = vector.load %arg4[%c0_6, %c0_7] : memref<8x128xf32, #tpu.memory_space<vmem>>, vector<8x128xf32>
    tpu.vector_store %arg4[%c0_6, %c0_7], %7 {strides = array<i32>} : memref<8x128xf32, #tpu.memory_space<vmem>>, vector<8x128xf32>,
    %9 = arith.mulf %6, %6 : vector<64x8x128xf32>
    %cst_8 = arith.constant dense<0.000000e+00> : vector<8x128xf32>
    %10 = vector.multi_reduction <add>, %9, %cst_8 [0] : vector<64x8x128xf32> to vector<8x128xf32>
    %c0_9 = arith.constant 0 : index
    %c0_10 = arith.constant 0 : index
    %11 = vector.load %arg5[%c0_9, %c0_10] : memref<8x128xf32, #tpu.memory_space<vmem>>, vector<8x128xf32>
    tpu.vector_store %arg5[%c0_9, %c0_10], %10 {strides = array<i32>} : memref<8x128xf32, #tpu.memory_space<vmem>>, vector<8x128xf32>,
    return
  }
  func.func @transform_0(%arg0: i32) -> (i32, i32) {
    %c0_i32 = arith.constant 0 : i32
    %c0_i32_0 = arith.constant 0 : i32
    return %arg0, %c0_i32 : i32, i32
  }
  func.func @transform_1(%arg0: i32) -> (i32, i32) {
    %c0_i32 = arith.constant 0 : i32
    %c0_i32_0 = arith.constant 0 : i32
    %c0_i32_1 = arith.constant 0 : i32
    return %c0_i32, %c0_i32_0 : i32, i32
  }
  func.func @transform_2(%arg0: i32) -> (i32, i32) {
    %c0_i32 = arith.constant 0 : i32
    %c0_i32_0 = arith.constant 0 : i32
    %c0_i32_1 = arith.constant 0 : i32
    return %c0_i32, %c0_i32_0 : i32, i32
  }
  func.func @transform_3(%arg0: i32) -> (i32, i32) {
    %c0_i32 = arith.constant 0 : i32
    %c0_i32_0 = arith.constant 0 : i32
    return %arg0, %c0_i32 : i32, i32
  }
  func.func @transform_4(%arg0: i32) -> (i32, i32) {
    %c0_i32 = arith.constant 0 : i32
    %c0_i32_0 = arith.constant 0 : i32
    return %arg0, %c0_i32 : i32, i32
  }
}

module attributes {stable_mosaic.version = 11 : i64} {
  func.func @kernel(%arg0: i32, %arg1: memref<512x4xf32, #tpu.memory_space<vmem>>, %arg2: memref<4x128xf32, #tpu.memory_space<vmem>>, %arg3: memref<1x128xf32, #tpu.memory_space<vmem>>, %arg4: memref<1x128xf32, #tpu.memory_space<vmem>>, %arg5: memref<1x128xf32, #tpu.memory_space<vmem>>, %arg6: memref<512x128xf32, #tpu.memory_space<vmem>>) attributes {dimension_semantics = [#tpu.dimension_semantics<parallel>], iteration_bounds = array<i64: 1>, scalar_prefetch = 0 : i64, scratch_operands = 0 : i64, tpu.core_type = #tpu.core_type<tc>, window_params = [{transform_indices = @transform_0, window_bounds = array<i64: 512, 4>}, {pipeline_mode = #tpu.pipeline_mode<synchronous>, transform_indices = @transform_1, window_bounds = array<i64: 4, 128>}, {pipeline_mode = #tpu.pipeline_mode<synchronous>, transform_indices = @transform_2, window_bounds = array<i64: 1, 128>}, {pipeline_mode = #tpu.pipeline_mode<synchronous>, transform_indices = @transform_3, window_bounds = array<i64: 1, 128>}, {pipeline_mode = #tpu.pipeline_mode<synchronous>, transform_indices = @transform_4, window_bounds = array<i64: 1, 128>}, {transform_indices = @transform_5, window_bounds = array<i64: 512, 128>}]} {
    %c0 = arith.constant 0 : index
    %c0_0 = arith.constant 0 : index
    %0 = vector.load %arg1[%c0, %c0_0] : memref<512x4xf32, #tpu.memory_space<vmem>>, vector<512x4xf32>
    %c0_1 = arith.constant 0 : index
    %c0_2 = arith.constant 0 : index
    %1 = vector.load %arg2[%c0_1, %c0_2] : memref<4x128xf32, #tpu.memory_space<vmem>>, vector<4x128xf32>
    %cst = arith.constant dense<0.000000e+00> : vector<512x128xf32>
    %2 = tpu.matmul %0, %1, %cst {dimension_numbers = #tpu.dot_dimension_numbers<[1], [0], [0], [1], [0, 0, 1, 1], [], []>} : vector<512x4xf32>, vector<4x128xf32>, vector<512x128xf32> -> vector<512x128xf32>
    %c0_3 = arith.constant 0 : index
    %c0_4 = arith.constant 0 : index
    %3 = vector.load %arg3[%c0_3, %c0_4] : memref<1x128xf32, #tpu.memory_space<vmem>>, vector<1x128xf32>
    %4 = vector.broadcast %3 : vector<1x128xf32> to vector<512x128xf32>
    %5 = arith.addf %2, %4 : vector<512x128xf32>
    %c0_5 = arith.constant 0 : index
    %c0_6 = arith.constant 0 : index
    %6 = vector.load %arg4[%c0_5, %c0_6] : memref<1x128xf32, #tpu.memory_space<vmem>>, vector<1x128xf32>
    %7 = vector.broadcast %6 : vector<1x128xf32> to vector<512x128xf32>
    %8 = arith.mulf %5, %7 : vector<512x128xf32>
    %c0_7 = arith.constant 0 : index
    %c0_8 = arith.constant 0 : index
    %9 = vector.load %arg5[%c0_7, %c0_8] : memref<1x128xf32, #tpu.memory_space<vmem>>, vector<1x128xf32>
    %10 = vector.broadcast %9 : vector<1x128xf32> to vector<512x128xf32>
    %11 = arith.addf %8, %10 : vector<512x128xf32>
    %c0_9 = arith.constant 0 : index
    %c0_10 = arith.constant 0 : index
    %12 = vector.load %arg6[%c0_9, %c0_10] : memref<512x128xf32, #tpu.memory_space<vmem>>, vector<512x128xf32>
    tpu.vector_store %arg6[%c0_9, %c0_10], %11 {strides = array<i32>} : memref<512x128xf32, #tpu.memory_space<vmem>>, vector<512x128xf32>,
    return
  }
  func.func @transform_0(%arg0: i32) -> (i32, i32) {
    %c0_i32 = arith.constant 0 : i32
    %c0_i32_0 = arith.constant 0 : i32
    return %arg0, %c0_i32 : i32, i32
  }
  func.func @transform_1(%arg0: i32) -> (i32, i32) {
    %c0_i32 = arith.constant 0 : i32
    %c0_i32_0 = arith.constant 0 : i32
    %c0_i32_1 = arith.constant 0 : i32
    return %c0_i32, %c0_i32_0 : i32, i32
  }
  func.func @transform_2(%arg0: i32) -> (i32, i32) {
    %c0_i32 = arith.constant 0 : i32
    %c0_i32_0 = arith.constant 0 : i32
    %c0_i32_1 = arith.constant 0 : i32
    return %c0_i32, %c0_i32_0 : i32, i32
  }
  func.func @transform_3(%arg0: i32) -> (i32, i32) {
    %c0_i32 = arith.constant 0 : i32
    %c0_i32_0 = arith.constant 0 : i32
    %c0_i32_1 = arith.constant 0 : i32
    return %c0_i32, %c0_i32_0 : i32, i32
  }
  func.func @transform_4(%arg0: i32) -> (i32, i32) {
    %c0_i32 = arith.constant 0 : i32
    %c0_i32_0 = arith.constant 0 : i32
    %c0_i32_1 = arith.constant 0 : i32
    return %c0_i32, %c0_i32_0 : i32, i32
  }
  func.func @transform_5(%arg0: i32) -> (i32, i32) {
    %c0_i32 = arith.constant 0 : i32
    %c0_i32_0 = arith.constant 0 : i32
    return %arg0, %c0_i32 : i32, i32
  }
}

</mosaic_0001>

<llo_original>
// kernel: tile.18
$region0: #{tile.18}
  #allocation0 [shape = 's32[1]{0}', space=sflag, size = 0x4, scoped, tag = 'scoped memory for tile.18']
  %s0 = inlined_call_operand.vmem [shape: f32[32], index: 0, kind: input, shape index: {}]
  %s1 = inlined_call_operand.vmem [shape: f32[4,32], index: 1, kind: output, shape index: {}]
  // Predicated region
  $region2: #{tile.18} parent=0 // pred_check
    _
  $region3: #{tile.18} parent=0 // pred_check_branch
    %3 = sbr.rel (0) target = $region5
  $region4: #{tile.18} parent=0 // pred_region
    _
  $region5: #{tile.18} parent=0 // pred_fallthru
    _
  %v4 = vld [vmem:[%s0] ss:$0 sm:$0xff]
  %5 = vst [vmem:[%s1] sm:$0xf] %v4

// kernel: tile.19
$region0: #{tile.19}
  %s0 = inlined_call_operand.vmem [shape: f32[4,32], index: 0, kind: input, shape index: {}]
  %s1 = inlined_call_operand.vmem [shape: f32[1,128], index: 1, kind: output, shape index: {}]
  $region1: #{tile.19} parent=0
    #allocation0 [shape = 'u8[4096]{0}', space=vmem, size = 0x1000, scoped, tag = 'scoped mem for output reshape']
    #allocation1 [shape = 'u8[4096]{0}', space=vmem, size = 0x1000, scoped, tag = 'scoped mem for input reshape']
    %s3 = sshllo.u32 0, 4
    %v4 = vld [vmem:[%s0] sm:%s3]
    %5 = vst [vmem:[#allocation1] sm:%s3] %v4
    %v6 = vld [vmem:[#allocation1] sm:$0x1]
    %vm7 = vcmask 261120
    %8 = vst.msk [vmem:[#allocation0] sm:$0x1] %vm7, %v6
    %s9 = scalar_lea.vmem [#allocation1], 3
    %v10 = vld [vmem:[%s9] sm:$0x1]
    %11 = vrot.lane.b32.xlu0 %v10, 96
    %v12 = vpop.permute.xlu0 %11
    %vm13 = vcmask 1048320
    %14 = vst.msk [vmem:[#allocation0] sm:$0x1] %vm13, %v12
    %s15 = scalar_lea.vmem [#allocation1], 2
    %v16 = vld [vmem:[%s15] sm:$0x1]
    %17 = vrot.lane.b32.xlu0 %v16, 64
    %v18 = vpop.permute.xlu0 %17
    %vm19 = vcmask 785920
    %20 = vst.msk [vmem:[#allocation0] sm:$0x1] %vm19, %v18
    %s21 = scalar_lea.vmem [#allocation1], 1
    %v22 = vld [vmem:[%s21] sm:$0x1]
    %23 = vrot.lane.b32.xlu0 %v22, 32
    %v24 = vpop.permute.xlu0 %23
    %vm25 = vcmask 523520
    %26 = vst.msk [vmem:[#allocation0] sm:$0x1] %vm25, %v24
    %s28 = sshllo.u32 0, 1
    %v30 = vld [vmem:[#allocation0] sm:%s28]
    %s31 = sshllo.u32 0, 1
    %32 = vst [vmem:[%s1] sm:%s31] %v30

// kernel: upsampling_layer_forward.2
$region0: #{upsampling_layer_forward.2}
  #allocation0 [shape = 'u32[]', space=smem, size = 0x4, offset = 0x4, fixed_abs, tag = 'smem constant byte address 0x4 - core index']
  #allocation1 [shape = 'u32[144,128]{1,0:T(1,128)}', space=vmem, size = 0x12000, scoped, tag = 'internal scratch']
  %s0 = inlined_call_operand.vmem [shape: f32[512,4], index: 0, kind: input, shape index: {}]
  %s1 = inlined_call_operand.vmem [shape: f32[4,128], index: 1, kind: input, shape index: {}]
  %s2 = inlined_call_operand.vmem [shape: f32[1,128], index: 2, kind: input, shape index: {}]
  %s3 = inlined_call_operand.vmem [shape: f32[8,128], index: 3, kind: output, shape index: {0}]
  %s4 = inlined_call_operand.vmem [shape: f32[8,128], index: 4, kind: output, shape index: {1}]
  %5 = xla_tuple %s3, %s4
  %s6 = sld [smem:[#allocation0]]
  $region30: #{upsampling_layer_forward.2} parent=0
    _
  %s8 = ssub.s32 1, %s6
  %s9 = scalar_select 0, %s8, %s6
  // Predicated region
  $region2: #{upsampling_layer_forward.2} parent=0 // pred_check
    _
  $region3: #{upsampling_layer_forward.2} parent=0 // pred_check_branch
    %11 = sbr.rel (0) target = $region5
  $region4: #{upsampling_layer_forward.2} parent=0 // pred_region
    _
  $region5: #{upsampling_layer_forward.2} parent=0 // pred_fallthru
    _
  // Predicated region
  $region6: #{upsampling_layer_forward.2} parent=0 // pred_check
    _
  $region7: #{upsampling_layer_forward.2} parent=0 // pred_check_branch
    %13 = sbr.rel (0) target = $region9
  $region8: #{upsampling_layer_forward.2} parent=0 // pred_region
    _
  $region9: #{upsampling_layer_forward.2} parent=0 // pred_fallthru
    _
  // Predicated region
  $region10: #{upsampling_layer_forward.2} parent=0 // pred_check
    _
  $region11: #{upsampling_layer_forward.2} parent=0 // pred_check_branch
    %15 = sbr.rel (0) target = $region13
  $region12: #{upsampling_layer_forward.2} parent=0 // pred_region
    _
  $region13: #{upsampling_layer_forward.2} parent=0 // pred_fallthru
    _
  %v16 = vld [vmem:[%s0] sm:$0xff]
  %v17 = vld [vmem:[%s0 + $0x8] sm:$0xff]
  %v18 = vld [vmem:[%s0 + $0x10] sm:$0xff]
  %v19 = vld [vmem:[%s0 + $0x18] sm:$0xff]
  %v20 = vld [vmem:[%s0 + $0x20] sm:$0xff]
  %v21 = vld [vmem:[%s0 + $0x28] sm:$0xff]
  %v22 = vld [vmem:[%s0 + $0x30] sm:$0xff]
  %v23 = vld [vmem:[%s0 + $0x38] sm:$0xff]
  %v24 = vld [vmem:[%s0 + $0x40] sm:$0xff]
  %v25 = vld [vmem:[%s0 + $0x48] sm:$0xff]
  %v26 = vld [vmem:[%s0 + $0x50] sm:$0xff]
  %v27 = vld [vmem:[%s0 + $0x58] sm:$0xff]
  %v28 = vld [vmem:[%s0 + $0x60] sm:$0xff]
  %v29 = vld [vmem:[%s0 + $0x68] sm:$0xff]
  %v30 = vld [vmem:[%s0 + $0x70] sm:$0xff]
  %v31 = vld [vmem:[%s0 + $0x78] sm:$0xff]
  %v32 = vld [vmem:[%s0 + $0x80] sm:$0xff]
  %v33 = vld [vmem:[%s0 + $0x88] sm:$0xff]
  %v34 = vld [vmem:[%s0 + $0x90] sm:$0xff]
  %v35 = vld [vmem:[%s0 + $0x98] sm:$0xff]
  %v36 = vld [vmem:[%s0 + $0xa0] sm:$0xff]
  %v37 = vld [vmem:[%s0 + $0xa8] sm:$0xff]
  %v38 = vld [vmem:[%s0 + $0xb0] sm:$0xff]
  %v39 = vld [vmem:[%s0 + $0xb8] sm:$0xff]
  %v40 = vld [vmem:[%s0 + $0xc0] sm:$0xff]
  %v41 = vld [vmem:[%s0 + $0xc8] sm:$0xff]
  %v42 = vld [vmem:[%s0 + $0xd0] sm:$0xff]
  %v43 = vld [vmem:[%s0 + $0xd8] sm:$0xff]
  %v44 = vld [vmem:[%s0 + $0xe0] sm:$0xff]
  %v45 = vld [vmem:[%s0 + $0xe8] sm:$0xff]
  %v46 = vld [vmem:[%s0 + $0xf0] sm:$0xff]
  %v47 = vld [vmem:[%s0 + $0xf8] sm:$0xff]
  %v48 = vld [vmem:[%s0 + $0x100] sm:$0xff]
  %v49 = vld [vmem:[%s0 + $0x108] sm:$0xff]
  %v50 = vld [vmem:[%s0 + $0x110] sm:$0xff]
  %v51 = vld [vmem:[%s0 + $0x118] sm:$0xff]
  %v52 = vld [vmem:[%s0 + $0x120] sm:$0xff]
  %v53 = vld [vmem:[%s0 + $0x128] sm:$0xff]
  %v54 = vld [vmem:[%s0 + $0x130] sm:$0xff]
  %v55 = vld [vmem:[%s0 + $0x138] sm:$0xff]
  %v56 = vld [vmem:[%s0 + $0x140] sm:$0xff]
  %v57 = vld [vmem:[%s0 + $0x148] sm:$0xff]
  %v58 = vld [vmem:[%s0 + $0x150] sm:$0xff]
  %v59 = vld [vmem:[%s0 + $0x158] sm:$0xff]
  %v60 = vld [vmem:[%s0 + $0x160] sm:$0xff]
  %v61 = vld [vmem:[%s0 + $0x168] sm:$0xff]
  %v62 = vld [vmem:[%s0 + $0x170] sm:$0xff]
  %v63 = vld [vmem:[%s0 + $0x178] sm:$0xff]
  %v64 = vld [vmem:[%s0 + $0x180] sm:$0xff]
  %v65 = vld [vmem:[%s0 + $0x188] sm:$0xff]
  %v66 = vld [vmem:[%s0 + $0x190] sm:$0xff]
  %v67 = vld [vmem:[%s0 + $0x198] sm:$0xff]
  %v68 = vld [vmem:[%s0 + $0x1a0] sm:$0xff]
  %v69 = vld [vmem:[%s0 + $0x1a8] sm:$0xff]
  %v70 = vld [vmem:[%s0 + $0x1b0] sm:$0xff]
  %v71 = vld [vmem:[%s0 + $0x1b8] sm:$0xff]
  %v72 = vld [vmem:[%s0 + $0x1c0] sm:$0xff]
  %v73 = vld [vmem:[%s0 + $0x1c8] sm:$0xff]
  %v74 = vld [vmem:[%s0 + $0x1d0] sm:$0xff]
  %v75 = vld [vmem:[%s0 + $0x1d8] sm:$0xff]
  %v76 = vld [vmem:[%s0 + $0x1e0] sm:$0xff]
  %v77 = vld [vmem:[%s0 + $0x1e8] sm:$0xff]
  %v78 = vld [vmem:[%s0 + $0x1f0] sm:$0xff]
  %v79 = vld [vmem:[%s0 + $0x1f8] sm:$0xff]
  %v80 = vld [vmem:[%s1] sm:$0xf]
  %v81 = vld [vmem:[%s2] sm:$0x1]
  %v83 = vlaneseq
  %v84 = vshrl.u32 %v83, 7
  %v85 = vsub.s32 0, %v84
  %v86 = vrot.slane %v81, %v85
  %vm88 = vcmask 31744
  %v90 = vsel %vm88, %v16, 0
  %v93 = vsel %vm88, %v17, 0
  %v96 = vsel %vm88, %v18, 0
  %v99 = vsel %vm88, %v19, 0
  %v102 = vsel %vm88, %v20, 0
  %v105 = vsel %vm88, %v21, 0
  %v108 = vsel %vm88, %v22, 0
  %v111 = vsel %vm88, %v23, 0
  %v114 = vsel %vm88, %v24, 0
  %v117 = vsel %vm88, %v25, 0
  %v120 = vsel %vm88, %v26, 0
  %v123 = vsel %vm88, %v27, 0
  %v126 = vsel %vm88, %v28, 0
  %v129 = vsel %vm88, %v29, 0
  %v132 = vsel %vm88, %v30, 0
  %v135 = vsel %vm88, %v31, 0
  %v138 = vsel %vm88, %v32, 0
  %v141 = vsel %vm88, %v33, 0
  %v144 = vsel %vm88, %v34, 0
  %v147 = vsel %vm88, %v35, 0
  %v150 = vsel %vm88, %v36, 0
  %v153 = vsel %vm88, %v37, 0
  %v156 = vsel %vm88, %v38, 0
  %v159 = vsel %vm88, %v39, 0
  %v162 = vsel %vm88, %v40, 0
  %v165 = vsel %vm88, %v41, 0
  %v168 = vsel %vm88, %v42, 0
  %v171 = vsel %vm88, %v43, 0
  %v174 = vsel %vm88, %v44, 0
  %v177 = vsel %vm88, %v45, 0
  %v180 = vsel %vm88, %v46, 0
  %v183 = vsel %vm88, %v47, 0
  %v186 = vsel %vm88, %v48, 0
  %v189 = vsel %vm88, %v49, 0
  %v192 = vsel %vm88, %v50, 0
  %v195 = vsel %vm88, %v51, 0
  %v198 = vsel %vm88, %v52, 0
  %v201 = vsel %vm88, %v53, 0
  %v204 = vsel %vm88, %v54, 0
  %v207 = vsel %vm88, %v55, 0
  %v210 = vsel %vm88, %v56, 0
  %v213 = vsel %vm88, %v57, 0
  %v216 = vsel %vm88, %v58, 0
  %v219 = vsel %vm88, %v59, 0
  %v222 = vsel %vm88, %v60, 0
  %v225 = vsel %vm88, %v61, 0
  %v228 = vsel %vm88, %v62, 0
  %v231 = vsel %vm88, %v63, 0
  %v234 = vsel %vm88, %v64, 0
  %v237 = vsel %vm88, %v65, 0
  %v240 = vsel %vm88, %v66, 0
  %v243 = vsel %vm88, %v67, 0
  %v246 = vsel %vm88, %v68, 0
  %v249 = vsel %vm88, %v69, 0
  %v252 = vsel %vm88, %v70, 0
  %v255 = vsel %vm88, %v71, 0
  %v258 = vsel %vm88, %v72, 0
  %v261 = vsel %vm88, %v73, 0
  %v264 = vsel %vm88, %v74, 0
  %v267 = vsel %vm88, %v75, 0
  %v270 = vsel %vm88, %v76, 0
  %v273 = vsel %vm88, %v77, 0
  %v276 = vsel %vm88, %v78, 0
  %v279 = vsel %vm88, %v79, 0
  %vm281 = vcmask 1043456
  %v283 = vsel %vm281, %v80, 0
  %285 = vmatprep.subr.mxu0 0.0
  %286 = vmatpush1.msra.mxu0 %v283
  %287 = vmatprep.subr.mxu0 0.0
  %288 = vmatpush1.msra.mxu0 0.0
  %289 = vmatprep.subr.mxu0 0.0
  %290 = vmatpush1.msra.mxu0 0.0
  %291 = vmatprep.subr.mxu0 0.0
  %292 = vmatpush1.msra.mxu0 0.0
  %293 = vmatprep.subr.mxu0 0.0
  %294 = vmatpush1.msra.mxu0 0.0
  %295 = vmatprep.subr.mxu0 0.0
  %296 = vmatpush1.msra.mxu0 0.0
  %297 = vmatprep.subr.mxu0 0.0
  %298 = vmatpush1.msra.mxu0 0.0
  %299 = vmatprep.subr.mxu0 0.0
  %300 = vmatpush1.msra.mxu0 0.0
  %301 = vmatprep.subr.mxu0 0.0
  %302 = vmatpush1.msra.mxu0 0.0
  %303 = vmatprep.subr.mxu0 0.0
  %304 = vmatpush1.msra.mxu0 0.0
  %305 = vmatprep.subr.mxu0 0.0
  %306 = vmatpush1.msra.mxu0 0.0
  %307 = vmatprep.subr.mxu0 0.0
  %308 = vmatpush1.msra.mxu0 0.0
  %309 = vmatprep.subr.mxu0 0.0
  %310 = vmatpush1.msra.mxu0 0.0
  %311 = vmatprep.subr.mxu0 0.0
  %312 = vmatpush1.msra.mxu0 0.0
  %313 = vmatprep.subr.mxu0 0.0
  %314 = vmatpush1.msra.mxu0 0.0
  %315 = vmatprep.subr.mxu0 0.0
  %316 = vmatpush1.msra.mxu0 0.0
  %317 = vmatprep.subr.mxu0 0.0
  %318 = vmatpush1.msra.mxu0 0.0
  %319 = vmatprep.subr.mxu0 0.0
  %320 = vmatpush1.msra.mxu0 0.0
  %321 = vmatprep.subr.mxu0 0.0
  %322 = vmatpush1.msra.mxu0 0.0
  %323 = vmatprep.subr.mxu0 0.0
  %324 = vmatpush1.msra.mxu0 0.0
  %325 = vmatprep.subr.mxu0 0.0
  %326 = vmatpush1.msra.mxu0 0.0
  %327 = vmatprep.subr.mxu0 0.0
  %328 = vmatpush1.msra.mxu0 0.0
  %329 = vmatprep.subr.mxu0 0.0
  %330 = vmatpush1.msra.mxu0 0.0
  %331 = vmatprep.subr.mxu0 0.0
  %332 = vmatpush1.msra.mxu0 0.0
  %333 = vmatprep.subr.mxu0 0.0
  %334 = vmatpush1.msra.mxu0 0.0
  %335 = vmatprep.subr.mxu0 0.0
  %336 = vmatpush1.msra.mxu0 0.0
  %337 = vmatprep.subr.mxu0 0.0
  %338 = vmatpush1.msra.mxu0 0.0
  %339 = vmatprep.subr.mxu0 0.0
  %340 = vmatpush1.msra.mxu0 0.0
  %341 = vmatprep.subr.mxu0 0.0
  %342 = vmatpush1.msra.mxu0 0.0
  %343 = vmatprep.subr.mxu0 0.0
  %344 = vmatpush1.msra.mxu0 0.0
  %345 = vmatprep.subr.mxu0 0.0
  %346 = vmatpush1.msra.mxu0 0.0
  %347 = vmatprep.subr.mxu0 0.0
  %348 = vmatpush1.msra.mxu0 0.0
  %349 = vmatprep.mubr.f32.mxu0 0.0
  %350 = vmatmul.mubr.f32.gmra.mrb[0].mxu0 %v90
  %v351 = vpop.f32.mrb[0].mxu0
  %v352 = vadd.f32 %v86, %v351
  %v353 = vpop.f32.mrb[0].mxu0
  %354 = vmatprep.mubr.f32.mxu0 0.0
  %355 = vmatmul.mubr.f32.gmra.mrb[0].mxu0 %v93
  %v356 = vpop.f32.mrb[0].mxu0
  %v357 = vadd.f32 %v86, %v356
  %v358 = vpop.f32.mrb[0].mxu0
  %359 = vmatprep.mubr.f32.mxu0 0.0
  %360 = vmatmul.mubr.f32.gmra.mrb[0].mxu0 %v96
  %v361 = vpop.f32.mrb[0].mxu0
  %v362 = vadd.f32 %v86, %v361
  %v363 = vpop.f32.mrb[0].mxu0
  %364 = vmatprep.mubr.f32.mxu0 0.0
  %365 = vmatmul.mubr.f32.gmra.mrb[0].mxu0 %v99
  %v366 = vpop.f32.mrb[0].mxu0
  %v367 = vadd.f32 %v86, %v366
  %v368 = vpop.f32.mrb[0].mxu0
  %369 = vmatprep.mubr.f32.mxu0 0.0
  %370 = vmatmul.mubr.f32.gmra.mrb[0].mxu0 %v102
  %v371 = vpop.f32.mrb[0].mxu0
  %v372 = vadd.f32 %v86, %v371
  %v373 = vpop.f32.mrb[0].mxu0
  %374 = vmatprep.mubr.f32.mxu0 0.0
  %375 = vmatmul.mubr.f32.gmra.mrb[0].mxu0 %v105
  %v376 = vpop.f32.mrb[0].mxu0
  %v377 = vadd.f32 %v86, %v376
  %v378 = vpop.f32.mrb[0].mxu0
  %379 = vmatprep.mubr.f32.mxu0 0.0
  %380 = vmatmul.mubr.f32.gmra.mrb[0].mxu0 %v108
  %v381 = vpop.f32.mrb[0].mxu0
  %v382 = vadd.f32 %v86, %v381
  %v383 = vpop.f32.mrb[0].mxu0
  %384 = vmatprep.mubr.f32.mxu0 0.0
  %385 = vmatmul.mubr.f32.gmra.mrb[0].mxu0 %v111
  %v386 = vpop.f32.mrb[0].mxu0
  %v387 = vadd.f32 %v86, %v386
  %v388 = vpop.f32.mrb[0].mxu0
  %389 = vmatprep.mubr.f32.mxu0 0.0
  %390 = vmatmul.mubr.f32.gmra.mrb[0].mxu0 %v114
  %v391 = vpop.f32.mrb[0].mxu0
  %v392 = vadd.f32 %v86, %v391
  %v393 = vpop.f32.mrb[0].mxu0
  %394 = vmatprep.mubr.f32.mxu0 0.0
  %395 = vmatmul.mubr.f32.gmra.mrb[0].mxu0 %v117
  %v396 = vpop.f32.mrb[0].mxu0
  %v397 = vadd.f32 %v86, %v396
  %v398 = vpop.f32.mrb[0].mxu0
  %399 = vmatprep.mubr.f32.mxu0 0.0
  %400 = vmatmul.mubr.f32.gmra.mrb[0].mxu0 %v120
  %v401 = vpop.f32.mrb[0].mxu0
  %v402 = vadd.f32 %v86, %v401
  %v403 = vpop.f32.mrb[0].mxu0
  %404 = vmatprep.mubr.f32.mxu0 0.0
  %405 = vmatmul.mubr.f32.gmra.mrb[0].mxu0 %v123
  %v406 = vpop.f32.mrb[0].mxu0
  %v407 = vadd.f32 %v86, %v406
  %v408 = vpop.f32.mrb[0].mxu0
  %409 = vmatprep.mubr.f32.mxu0 0.0
  %410 = vmatmul.mubr.f32.gmra.mrb[0].mxu0 %v126
  %v411 = vpop.f32.mrb[0].mxu0
  %v412 = vadd.f32 %v86, %v411
  %v413 = vpop.f32.mrb[0].mxu0
  %414 = vmatprep.mubr.f32.mxu0 0.0
  %415 = vmatmul.mubr.f32.gmra.mrb[0].mxu0 %v129
  %v416 = vpop.f32.mrb[0].mxu0
  %v417 = vadd.f32 %v86, %v416
  %v418 = vpop.f32.mrb[0].mxu0
  %419 = vmatprep.mubr.f32.mxu0 0.0
  %420 = vmatmul.mubr.f32.gmra.mrb[0].mxu0 %v132
  %v421 = vpop.f32.mrb[0].mxu0
  %v422 = vadd.f32 %v86, %v421
  %v423 = vpop.f32.mrb[0].mxu0
  %424 = vmatprep.mubr.f32.mxu0 0.0
  %425 = vmatmul.mubr.f32.gmra.mrb[0].mxu0 %v135
  %v426 = vpop.f32.mrb[0].mxu0
  %v427 = vadd.f32 %v86, %v426
  %v428 = vpop.f32.mrb[0].mxu0
  %429 = vmatprep.mubr.f32.mxu0 0.0
  %430 = vmatmul.mubr.f32.gmra.mrb[0].mxu0 %v138
  %v431 = vpop.f32.mrb[0].mxu0
  %v432 = vadd.f32 %v86, %v431
  %v433 = vpop.f32.mrb[0].mxu0
  %434 = vmatprep.mubr.f32.mxu0 0.0
  %435 = vmatmul.mubr.f32.gmra.mrb[0].mxu0 %v141
  %v436 = vpop.f32.mrb[0].mxu0
  %v437 = vadd.f32 %v86, %v436
  %v438 = vpop.f32.mrb[0].mxu0
  %439 = vmatprep.mubr.f32.mxu0 0.0
  %440 = vmatmul.mubr.f32.gmra.mrb[0].mxu0 %v144
  %v441 = vpop.f32.mrb[0].mxu0
  %v442 = vadd.f32 %v86, %v441
  %v443 = vpop.f32.mrb[0].mxu0
  %444 = vmatprep.mubr.f32.mxu0 0.0
  %445 = vmatmul.mubr.f32.gmra.mrb[0].mxu0 %v147
  %v446 = vpop.f32.mrb[0].mxu0
  %v447 = vadd.f32 %v86, %v446
  %v448 = vpop.f32.mrb[0].mxu0
  %449 = vmatprep.mubr.f32.mxu0 0.0
  %450 = vmatmul.mubr.f32.gmra.mrb[0].mxu0 %v150
  %v451 = vpop.f32.mrb[0].mxu0
  %v452 = vadd.f32 %v86, %v451
  %v453 = vpop.f32.mrb[0].mxu0
  %454 = vmatprep.mubr.f32.mxu0 0.0
  %455 = vmatmul.mubr.f32.gmra.mrb[0].mxu0 %v153
  %v456 = vpop.f32.mrb[0].mxu0
  %v457 = vadd.f32 %v86, %v456
  %v458 = vpop.f32.mrb[0].mxu0
  %459 = vmatprep.mubr.f32.mxu0 0.0
  %460 = vmatmul.mubr.f32.gmra.mrb[0].mxu0 %v156
  %v461 = vpop.f32.mrb[0].mxu0
  %v462 = vadd.f32 %v86, %v461
  %v463 = vpop.f32.mrb[0].mxu0
  %464 = vmatprep.mubr.f32.mxu0 0.0
  %465 = vmatmul.mubr.f32.gmra.mrb[0].mxu0 %v159
  %v466 = vpop.f32.mrb[0].mxu0
  %v467 = vadd.f32 %v86, %v466
  %v468 = vpop.f32.mrb[0].mxu0
  %469 = vmatprep.mubr.f32.mxu0 0.0
  %470 = vmatmul.mubr.f32.gmra.mrb[0].mxu0 %v162
  %v471 = vpop.f32.mrb[0].mxu0
  %v472 = vadd.f32 %v86, %v471
  %v473 = vpop.f32.mrb[0].mxu0
  %474 = vmatprep.mubr.f32.mxu0 0.0
  %475 = vmatmul.mubr.f32.gmra.mrb[0].mxu0 %v165
  %v476 = vpop.f32.mrb[0].mxu0
  %v477 = vadd.f32 %v86, %v476
  %v478 = vpop.f32.mrb[0].mxu0
  %479 = vmatprep.mubr.f32.mxu0 0.0
  %480 = vmatmul.mubr.f32.gmra.mrb[0].mxu0 %v168
  %v481 = vpop.f32.mrb[0].mxu0
  %v482 = vadd.f32 %v86, %v481
  %v483 = vpop.f32.mrb[0].mxu0
  %484 = vmatprep.mubr.f32.mxu0 0.0
  %485 = vmatmul.mubr.f32.gmra.mrb[0].mxu0 %v171
  %v486 = vpop.f32.mrb[0].mxu0
  %v487 = vadd.f32 %v86, %v486
  %v488 = vpop.f32.mrb[0].mxu0
  %489 = vmatprep.mubr.f32.mxu0 0.0
  %490 = vmatmul.mubr.f32.gmra.mrb[0].mxu0 %v174
  %v491 = vpop.f32.mrb[0].mxu0
  %v492 = vadd.f32 %v86, %v491
  %v493 = vpop.f32.mrb[0].mxu0
  %494 = vmatprep.mubr.f32.mxu0 0.0
  %495 = vmatmul.mubr.f32.gmra.mrb[0].mxu0 %v177
  %v496 = vpop.f32.mrb[0].mxu0
  %v497 = vadd.f32 %v86, %v496
  %v498 = vpop.f32.mrb[0].mxu0
  %499 = vmatprep.mubr.f32.mxu0 0.0
  %500 = vmatmul.mubr.f32.gmra.mrb[0].mxu0 %v180
  %v501 = vpop.f32.mrb[0].mxu0
  %v502 = vadd.f32 %v86, %v501
  %v503 = vpop.f32.mrb[0].mxu0
  %504 = vmatprep.mubr.f32.mxu0 0.0
  %505 = vmatmul.mubr.f32.gmra.mrb[0].mxu0 %v183
  %v506 = vpop.f32.mrb[0].mxu0
  %v507 = vadd.f32 %v86, %v506
  %v508 = vpop.f32.mrb[0].mxu0
  %509 = vmatprep.mubr.f32.mxu0 0.0
  %510 = vmatmul.mubr.f32.gmra.mrb[0].mxu0 %v186
  %v511 = vpop.f32.mrb[0].mxu0
  %v512 = vadd.f32 %v86, %v511
  %v513 = vpop.f32.mrb[0].mxu0
  %514 = vmatprep.mubr.f32.mxu0 0.0
  %515 = vmatmul.mubr.f32.gmra.mrb[0].mxu0 %v189
  %v516 = vpop.f32.mrb[0].mxu0
  %v517 = vadd.f32 %v86, %v516
  %v518 = vpop.f32.mrb[0].mxu0
  %519 = vmatprep.mubr.f32.mxu0 0.0
  %520 = vmatmul.mubr.f32.gmra.mrb[0].mxu0 %v192
  %v521 = vpop.f32.mrb[0].mxu0
  %v522 = vadd.f32 %v86, %v521
  %v523 = vpop.f32.mrb[0].mxu0
  %524 = vmatprep.mubr.f32.mxu0 0.0
  %525 = vmatmul.mubr.f32.gmra.mrb[0].mxu0 %v195
  %v526 = vpop.f32.mrb[0].mxu0
  %v527 = vadd.f32 %v86, %v526
  %v528 = vpop.f32.mrb[0].mxu0
  %529 = vmatprep.mubr.f32.mxu0 0.0
  %530 = vmatmul.mubr.f32.gmra.mrb[0].mxu0 %v198
  %v531 = vpop.f32.mrb[0].mxu0
  %v532 = vadd.f32 %v86, %v531
  %v533 = vpop.f32.mrb[0].mxu0
  %534 = vmatprep.mubr.f32.mxu0 0.0
  %535 = vmatmul.mubr.f32.gmra.mrb[0].mxu0 %v201
  %v536 = vpop.f32.mrb[0].mxu0
  %v537 = vadd.f32 %v86, %v536
  %v538 = vpop.f32.mrb[0].mxu0
  %539 = vmatprep.mubr.f32.mxu0 0.0
  %540 = vmatmul.mubr.f32.gmra.mrb[0].mxu0 %v204
  %v541 = vpop.f32.mrb[0].mxu0
  %v542 = vadd.f32 %v86, %v541
  %v543 = vpop.f32.mrb[0].mxu0
  %544 = vmatprep.mubr.f32.mxu0 0.0
  %545 = vmatmul.mubr.f32.gmra.mrb[0].mxu0 %v207
  %v546 = vpop.f32.mrb[0].mxu0
  %v547 = vadd.f32 %v86, %v546
  %v548 = vpop.f32.mrb[0].mxu0
  %549 = vmatprep.mubr.f32.mxu0 0.0
  %550 = vmatmul.mubr.f32.gmra.mrb[0].mxu0 %v210
  %v551 = vpop.f32.mrb[0].mxu0
  %v552 = vadd.f32 %v86, %v551
  %v553 = vpop.f32.mrb[0].mxu0
  %554 = vmatprep.mubr.f32.mxu0 0.0
  %555 = vmatmul.mubr.f32.gmra.mrb[0].mxu0 %v213
  %v556 = vpop.f32.mrb[0].mxu0
  %v557 = vadd.f32 %v86, %v556
  %v558 = vpop.f32.mrb[0].mxu0
  %559 = vmatprep.mubr.f32.mxu0 0.0
  %560 = vmatmul.mubr.f32.gmra.mrb[0].mxu0 %v216
  %v561 = vpop.f32.mrb[0].mxu0
  %v562 = vadd.f32 %v86, %v561
  %v563 = vpop.f32.mrb[0].mxu0
  %564 = vmatprep.mubr.f32.mxu0 0.0
  %565 = vmatmul.mubr.f32.gmra.mrb[0].mxu0 %v219
  %v566 = vpop.f32.mrb[0].mxu0
  %v567 = vadd.f32 %v86, %v566
  %v568 = vpop.f32.mrb[0].mxu0
  %569 = vmatprep.mubr.f32.mxu0 0.0
  %570 = vmatmul.mubr.f32.gmra.mrb[0].mxu0 %v222
  %v571 = vpop.f32.mrb[0].mxu0
  %v572 = vadd.f32 %v86, %v571
  %v573 = vpop.f32.mrb[0].mxu0
  %574 = vmatprep.mubr.f32.mxu0 0.0
  %575 = vmatmul.mubr.f32.gmra.mrb[0].mxu0 %v225
  %v576 = vpop.f32.mrb[0].mxu0
  %v577 = vadd.f32 %v86, %v576
  %v578 = vpop.f32.mrb[0].mxu0
  %579 = vmatprep.mubr.f32.mxu0 0.0
  %580 = vmatmul.mubr.f32.gmra.mrb[0].mxu0 %v228
  %v581 = vpop.f32.mrb[0].mxu0
  %v582 = vadd.f32 %v86, %v581
  %v583 = vpop.f32.mrb[0].mxu0
  %584 = vmatprep.mubr.f32.mxu0 0.0
  %585 = vmatmul.mubr.f32.gmra.mrb[0].mxu0 %v231
  %v586 = vpop.f32.mrb[0].mxu0
  %v587 = vadd.f32 %v86, %v586
  %v588 = vpop.f32.mrb[0].mxu0
  %589 = vmatprep.mubr.f32.mxu0 0.0
  %590 = vmatmul.mubr.f32.gmra.mrb[0].mxu0 %v234
  %v591 = vpop.f32.mrb[0].mxu0
  %v592 = vadd.f32 %v86, %v591
  %v593 = vpop.f32.mrb[0].mxu0
  %594 = vmatprep.mubr.f32.mxu0 0.0
  %595 = vmatmul.mubr.f32.gmra.mrb[0].mxu0 %v237
  %v596 = vpop.f32.mrb[0].mxu0
  %v597 = vadd.f32 %v86, %v596
  %v598 = vpop.f32.mrb[0].mxu0
  %599 = vmatprep.mubr.f32.mxu0 0.0
  %600 = vmatmul.mubr.f32.gmra.mrb[0].mxu0 %v240
  %v601 = vpop.f32.mrb[0].mxu0
  %v602 = vadd.f32 %v86, %v601
  %v603 = vpop.f32.mrb[0].mxu0
  %604 = vmatprep.mubr.f32.mxu0 0.0
  %605 = vmatmul.mubr.f32.gmra.mrb[0].mxu0 %v243
  %v606 = vpop.f32.mrb[0].mxu0
  %v607 = vadd.f32 %v86, %v606
  %v608 = vpop.f32.mrb[0].mxu0
  %609 = vmatprep.mubr.f32.mxu0 0.0
  %610 = vmatmul.mubr.f32.gmra.mrb[0].mxu0 %v246
  %v611 = vpop.f32.mrb[0].mxu0
  %v612 = vadd.f32 %v86, %v611
  %v613 = vpop.f32.mrb[0].mxu0
  %614 = vmatprep.mubr.f32.mxu0 0.0
  %615 = vmatmul.mubr.f32.gmra.mrb[0].mxu0 %v249
  %v616 = vpop.f32.mrb[0].mxu0
  %v617 = vadd.f32 %v86, %v616
  %v618 = vpop.f32.mrb[0].mxu0
  %619 = vmatprep.mubr.f32.mxu0 0.0
  %620 = vmatmul.mubr.f32.gmra.mrb[0].mxu0 %v252
  %v621 = vpop.f32.mrb[0].mxu0
  %v622 = vadd.f32 %v86, %v621
  %v623 = vpop.f32.mrb[0].mxu0
  %624 = vmatprep.mubr.f32.mxu0 0.0
  %625 = vmatmul.mubr.f32.gmra.mrb[0].mxu0 %v255
  %v626 = vpop.f32.mrb[0].mxu0
  %v627 = vadd.f32 %v86, %v626
  %v628 = vpop.f32.mrb[0].mxu0
  %629 = vmatprep.mubr.f32.mxu0 0.0
  %630 = vmatmul.mubr.f32.gmra.mrb[0].mxu0 %v258
  %v631 = vpop.f32.mrb[0].mxu0
  %v632 = vadd.f32 %v86, %v631
  %v633 = vpop.f32.mrb[0].mxu0
  %634 = vmatprep.mubr.f32.mxu0 0.0
  %635 = vmatmul.mubr.f32.gmra.mrb[0].mxu0 %v261
  %v636 = vpop.f32.mrb[0].mxu0
  %v637 = vadd.f32 %v86, %v636
  %v638 = vpop.f32.mrb[0].mxu0
  %639 = vmatprep.mubr.f32.mxu0 0.0
  %640 = vmatmul.mubr.f32.gmra.mrb[0].mxu0 %v264
  %v641 = vpop.f32.mrb[0].mxu0
  %v642 = vadd.f32 %v86, %v641
  %v643 = vpop.f32.mrb[0].mxu0
  %644 = vmatprep.mubr.f32.mxu0 0.0
  %645 = vmatmul.mubr.f32.gmra.mrb[0].mxu0 %v267
  %v646 = vpop.f32.mrb[0].mxu0
  %v647 = vadd.f32 %v86, %v646
  %v648 = vpop.f32.mrb[0].mxu0
  %649 = vmatprep.mubr.f32.mxu0 0.0
  %650 = vmatmul.mubr.f32.gmra.mrb[0].mxu0 %v270
  %v651 = vpop.f32.mrb[0].mxu0
  %v652 = vadd.f32 %v86, %v651
  %v653 = vpop.f32.mrb[0].mxu0
  %654 = vmatprep.mubr.f32.mxu0 0.0
  %655 = vmatmul.mubr.f32.gmra.mrb[0].mxu0 %v273
  %v656 = vpop.f32.mrb[0].mxu0
  %v657 = vadd.f32 %v86, %v656
  %v658 = vpop.f32.mrb[0].mxu0
  %659 = vmatprep.mubr.f32.mxu0 0.0
  %660 = vmatmul.mubr.f32.gmra.mrb[0].mxu0 %v276
  %v661 = vpop.f32.mrb[0].mxu0
  %v662 = vadd.f32 %v86, %v661
  %v663 = vpop.f32.mrb[0].mxu0
  %664 = vmatprep.mubr.f32.mxu0 0.0
  %665 = vmatmul.mubr.f32.gmra.mrb[0].mxu0 %v279
  %v666 = vpop.f32.mrb[0].mxu0
  %v667 = vadd.f32 %v86, %v666
  %v668 = vpop.f32.mrb[0].mxu0
  %669 = vdwg.mxu0
  %v670 = vadd.f32 %v352, %v357
  %v671 = vadd.f32 %v670, %v362
  %v672 = vadd.f32 %v671, %v367
  %v673 = vadd.f32 %v672, %v372
  %v674 = vadd.f32 %v673, %v377
  %v675 = vadd.f32 %v674, %v382
  %v676 = vadd.f32 %v675, %v387
  %v677 = vadd.f32 %v676, %v392
  %v678 = vadd.f32 %v677, %v397
  %v679 = vadd.f32 %v678, %v402
  %v680 = vadd.f32 %v679, %v407
  %v681 = vadd.f32 %v680, %v412
  %v682 = vadd.f32 %v681, %v417
  %v683 = vadd.f32 %v682, %v422
  %v684 = vadd.f32 %v683, %v427
  %v685 = vadd.f32 %v684, %v432
  %v686 = vadd.f32 %v685, %v437
  %v687 = vadd.f32 %v686, %v442
  %v688 = vadd.f32 %v687, %v447
  %v689 = vadd.f32 %v688, %v452
  %v690 = vadd.f32 %v689, %v457
  %v691 = vadd.f32 %v690, %v462
  %v692 = vadd.f32 %v691, %v467
  %v693 = vadd.f32 %v692, %v472
  %v694 = vadd.f32 %v693, %v477
  %v695 = vadd.f32 %v694, %v482
  %v696 = vadd.f32 %v695, %v487
  %v697 = vadd.f32 %v696, %v492
  %v698 = vadd.f32 %v697, %v497
  %v699 = vadd.f32 %v698, %v502
  %v700 = vadd.f32 %v699, %v507
  %v701 = vadd.f32 %v700, %v512
  %v702 = vadd.f32 %v701, %v517
  %v703 = vadd.f32 %v702, %v522
  %v704 = vadd.f32 %v703, %v527
  %v705 = vadd.f32 %v704, %v532
  %v706 = vadd.f32 %v705, %v537
  %v707 = vadd.f32 %v706, %v542
  %v708 = vadd.f32 %v707, %v547
  %v709 = vadd.f32 %v708, %v552
  %v710 = vadd.f32 %v709, %v557
  %v711 = vadd.f32 %v710, %v562
  %v712 = vadd.f32 %v711, %v567
  %v713 = vadd.f32 %v712, %v572
  %v714 = vadd.f32 %v713, %v577
  %v715 = vadd.f32 %v714, %v582
  %v716 = vadd.f32 %v715, %v587
  %v717 = vadd.f32 %v716, %v592
  %v718 = vadd.f32 %v717, %v597
  %v719 = vadd.f32 %v718, %v602
  %v720 = vadd.f32 %v719, %v607
  %v721 = vadd.f32 %v720, %v612
  %v722 = vadd.f32 %v721, %v617
  %v723 = vadd.f32 %v722, %v622
  %v724 = vadd.f32 %v723, %v627
  %v725 = vadd.f32 %v724, %v632
  %v726 = vadd.f32 %v725, %v637
  %v727 = vadd.f32 %v726, %v642
  %v728 = vadd.f32 %v727, %v647
  %v729 = vadd.f32 %v728, %v652
  %v730 = vadd.f32 %v729, %v657
  %v731 = vadd.f32 %v730, %v662
  %v732 = vadd.f32 %v731, %v667
  %733 = vst [vmem:[%s3] sm:$0xff] %v732
  %v734 = vmul.f32 %v352, %v352
  %v735 = vmul.f32 %v357, %v357
  %v736 = vmul.f32 %v362, %v362
  %v737 = vmul.f32 %v367, %v367
  %v738 = vmul.f32 %v372, %v372
  %v739 = vmul.f32 %v377, %v377
  %v740 = vmul.f32 %v382, %v382
  %v741 = vmul.f32 %v387, %v387
  %v742 = vmul.f32 %v392, %v392
  %v743 = vmul.f32 %v397, %v397
  %v744 = vmul.f32 %v402, %v402
  %v745 = vmul.f32 %v407, %v407
  %v746 = vmul.f32 %v412, %v412
  %v747 = vmul.f32 %v417, %v417
  %v748 = vmul.f32 %v422, %v422
  %v749 = vmul.f32 %v427, %v427
  %v750 = vmul.f32 %v432, %v432
  %v751 = vmul.f32 %v437, %v437
  %v752 = vmul.f32 %v442, %v442
  %v753 = vmul.f32 %v447, %v447
  %v754 = vmul.f32 %v452, %v452
  %v755 = vmul.f32 %v457, %v457
  %v756 = vmul.f32 %v462, %v462
  %v757 = vmul.f32 %v467, %v467
  %v758 = vmul.f32 %v472, %v472
  %v759 = vmul.f32 %v477, %v477
  %v760 = vmul.f32 %v482, %v482
  %v761 = vmul.f32 %v487, %v487
  %v762 = vmul.f32 %v492, %v492
  %v763 = vmul.f32 %v497, %v497
  %v764 = vmul.f32 %v502, %v502
  %v765 = vmul.f32 %v507, %v507
  %v766 = vmul.f32 %v512, %v512
  %v767 = vmul.f32 %v517, %v517
  %v768 = vmul.f32 %v522, %v522
  %v769 = vmul.f32 %v527, %v527
  %v770 = vmul.f32 %v532, %v532
  %v771 = vmul.f32 %v537, %v537
  %v772 = vmul.f32 %v542, %v542
  %v773 = vmul.f32 %v547, %v547
  %v774 = vmul.f32 %v552, %v552
  %v775 = vmul.f32 %v557, %v557
  %v776 = vmul.f32 %v562, %v562
  %v777 = vmul.f32 %v567, %v567
  %v778 = vmul.f32 %v572, %v572
  %v779 = vmul.f32 %v577, %v577
  %v780 = vmul.f32 %v582, %v582
  %v781 = vmul.f32 %v587, %v587
  %v782 = vmul.f32 %v592, %v592
  %v783 = vmul.f32 %v597, %v597
  %v784 = vmul.f32 %v602, %v602
  %v785 = vmul.f32 %v607, %v607
  %v786 = vmul.f32 %v612, %v612
  %v787 = vmul.f32 %v617, %v617
  %v788 = vmul.f32 %v622, %v622
  %v789 = vmul.f32 %v627, %v627
  %v790 = vmul.f32 %v632, %v632
  %v791 = vmul.f32 %v637, %v637
  %v792 = vmul.f32 %v642, %v642
  %v793 = vmul.f32 %v647, %v647
  %v794 = vmul.f32 %v652, %v652
  %v795 = vmul.f32 %v657, %v657
  %v796 = vmul.f32 %v662, %v662
  %v797 = vmul.f32 %v667, %v667
  %v798 = vadd.f32 %v734, %v735
  %v799 = vadd.f32 %v798, %v736
  %v800 = vadd.f32 %v799, %v737
  %v801 = vadd.f32 %v800, %v738
  %v802 = vadd.f32 %v801, %v739
  %v803 = vadd.f32 %v802, %v740
  %v804 = vadd.f32 %v803, %v741
  %v805 = vadd.f32 %v804, %v742
  %v806 = vadd.f32 %v805, %v743
  %v807 = vadd.f32 %v806, %v744
  %v808 = vadd.f32 %v807, %v745
  %v809 = vadd.f32 %v808, %v746
  %v810 = vadd.f32 %v809, %v747
  %v811 = vadd.f32 %v810, %v748
  %v812 = vadd.f32 %v811, %v749
  %v813 = vadd.f32 %v812, %v750
  %v814 = vadd.f32 %v813, %v751
  %v815 = vadd.f32 %v814, %v752
  %v816 = vadd.f32 %v815, %v753
  %v817 = vadd.f32 %v816, %v754
  %v818 = vadd.f32 %v817, %v755
  %v819 = vadd.f32 %v818, %v756
  %v820 = vadd.f32 %v819, %v757
  %v821 = vadd.f32 %v820, %v758
  %v822 = vadd.f32 %v821, %v759
  %v823 = vadd.f32 %v822, %v760
  %v824 = vadd.f32 %v823, %v761
  %v825 = vadd.f32 %v824, %v762
  %v826 = vadd.f32 %v825, %v763
  %v827 = vadd.f32 %v826, %v764
  %v828 = vadd.f32 %v827, %v765
  %v829 = vadd.f32 %v828, %v766
  %v830 = vadd.f32 %v829, %v767
  %v831 = vadd.f32 %v830, %v768
  %v832 = vadd.f32 %v831, %v769
  %v833 = vadd.f32 %v832, %v770
  %v834 = vadd.f32 %v833, %v771
  %v835 = vadd.f32 %v834, %v772
  %v836 = vadd.f32 %v835, %v773
  %v837 = vadd.f32 %v836, %v774
  %v838 = vadd.f32 %v837, %v775
  %v839 = vadd.f32 %v838, %v776
  %v840 = vadd.f32 %v839, %v777
  %v841 = vadd.f32 %v840, %v778
  %v842 = vadd.f32 %v841, %v779
  %v843 = vadd.f32 %v842, %v780
  %v844 = vadd.f32 %v843, %v781
  %v845 = vadd.f32 %v844, %v782
  %v846 = vadd.f32 %v845, %v783
  %v847 = vadd.f32 %v846, %v784
  %v848 = vadd.f32 %v847, %v785
  %v849 = vadd.f32 %v848, %v786
  %v850 = vadd.f32 %v849, %v787
  %v851 = vadd.f32 %v850, %v788
  %v852 = vadd.f32 %v851, %v789
  %v853 = vadd.f32 %v852, %v790
  %v854 = vadd.f32 %v853, %v791
  %v855 = vadd.f32 %v854, %v792
  %v856 = vadd.f32 %v855, %v793
  %v857 = vadd.f32 %v856, %v794
  %v858 = vadd.f32 %v857, %v795
  %v859 = vadd.f32 %v858, %v796
  %v860 = vadd.f32 %v859, %v797
  %861 = vst [vmem:[%s4] sm:$0xff] %v860
  // Predicated region
  $region14: #{upsampling_layer_forward.2} parent=0 // pred_check
    _
  $region15: #{upsampling_layer_forward.2} parent=0 // pred_check_branch
    %863 = sbr.rel (0) target = $region17
  $region16: #{upsampling_layer_forward.2} parent=0 // pred_region
    _
  $region17: #{upsampling_layer_forward.2} parent=0 // pred_fallthru
    _
  // Predicated region
  $region18: #{upsampling_layer_forward.2} parent=0 // pred_check
    _
  $region19: #{upsampling_layer_forward.2} parent=0 // pred_check_branch
    %865 = sbr.rel (0) target = $region21
  $region20: #{upsampling_layer_forward.2} parent=0 // pred_region
    _
  $region21: #{upsampling_layer_forward.2} parent=0 // pred_fallthru
    _
  // Predicated region
  $region22: #{upsampling_layer_forward.2} parent=0 // pred_check
    _
  $region23: #{upsampling_layer_forward.2} parent=0 // pred_check_branch
    %867 = sbr.rel (0) target = $region25
  $region24: #{upsampling_layer_forward.2} parent=0 // pred_region
    _
  $region25: #{upsampling_layer_forward.2} parent=0 // pred_fallthru
    _
  // Predicated region
  $region26: #{upsampling_layer_forward.2} parent=0 // pred_check
    _
  $region27: #{upsampling_layer_forward.2} parent=0 // pred_check_branch
    %869 = sbr.rel (0) target = $region29
  $region28: #{upsampling_layer_forward.2} parent=0 // pred_region
    _
  $region29: #{upsampling_layer_forward.2} parent=0 // pred_fallthru
    _

// kernel: upsampling_layer_forward.3
$region0: #{upsampling_layer_forward.3}
  #allocation0 [shape = 'u32[]', space=smem, size = 0x4, offset = 0x4, fixed_abs, tag = 'smem constant byte address 0x4 - core index']
  #allocation1 [shape = 'u32[144,128]{1,0:T(1,128)}', space=vmem, size = 0x12000, scoped, tag = 'internal scratch']
  %s0 = inlined_call_operand.vmem [shape: f32[512,4], index: 0, kind: input, shape index: {}]
  %s1 = inlined_call_operand.vmem [shape: f32[4,128], index: 1, kind: input, shape index: {}]
  %s2 = inlined_call_operand.vmem [shape: f32[1,128], index: 2, kind: input, shape index: {}]
  %s3 = inlined_call_operand.vmem [shape: f32[1,128], index: 3, kind: input, shape index: {}]
  %s4 = inlined_call_operand.vmem [shape: f32[1,128], index: 4, kind: input, shape index: {}]
  %s5 = inlined_call_operand.vmem [shape: f32[512,128], index: 5, kind: output, shape index: {}]
  %s6 = sld [smem:[#allocation0]]
  $region30: #{upsampling_layer_forward.3} parent=0
    _
  %s8 = ssub.s32 1, %s6
  %s9 = scalar_select 0, %s8, %s6
  // Predicated region
  $region2: #{upsampling_layer_forward.3} parent=0 // pred_check
    _
  $region3: #{upsampling_layer_forward.3} parent=0 // pred_check_branch
    %11 = sbr.rel (0) target = $region5
  $region4: #{upsampling_layer_forward.3} parent=0 // pred_region
    _
  $region5: #{upsampling_layer_forward.3} parent=0 // pred_fallthru
    _
  // Predicated region
  $region6: #{upsampling_layer_forward.3} parent=0 // pred_check
    _
  $region7: #{upsampling_layer_forward.3} parent=0 // pred_check_branch
    %13 = sbr.rel (0) target = $region9
  $region8: #{upsampling_layer_forward.3} parent=0 // pred_region
    _
  $region9: #{upsampling_layer_forward.3} parent=0 // pred_fallthru
    _
  // Predicated region
  $region10: #{upsampling_layer_forward.3} parent=0 // pred_check
    _
  $region11: #{upsampling_layer_forward.3} parent=0 // pred_check_branch
    %15 = sbr.rel (0) target = $region13
  $region12: #{upsampling_layer_forward.3} parent=0 // pred_region
    _
  $region13: #{upsampling_layer_forward.3} parent=0 // pred_fallthru
    _
  // Predicated region
  $region14: #{upsampling_layer_forward.3} parent=0 // pred_check
    _
  $region15: #{upsampling_layer_forward.3} parent=0 // pred_check_branch
    %17 = sbr.rel (0) target = $region17
  $region16: #{upsampling_layer_forward.3} parent=0 // pred_region
    _
  $region17: #{upsampling_layer_forward.3} parent=0 // pred_fallthru
    _
  // Predicated region
  $region18: #{upsampling_layer_forward.3} parent=0 // pred_check
    _
  $region19: #{upsampling_layer_forward.3} parent=0 // pred_check_branch
    %19 = sbr.rel (0) target = $region21
  $region20: #{upsampling_layer_forward.3} parent=0 // pred_region
    _
  $region21: #{upsampling_layer_forward.3} parent=0 // pred_fallthru
    _
  %v20 = vld [vmem:[%s0] sm:$0xff]
  %v21 = vld [vmem:[%s0 + $0x8] sm:$0xff]
  %v22 = vld [vmem:[%s0 + $0x10] sm:$0xff]
  %v23 = vld [vmem:[%s0 + $0x18] sm:$0xff]
  %v24 = vld [vmem:[%s0 + $0x20] sm:$0xff]
  %v25 = vld [vmem:[%s0 + $0x28] sm:$0xff]
  %v26 = vld [vmem:[%s0 + $0x30] sm:$0xff]
  %v27 = vld [vmem:[%s0 + $0x38] sm:$0xff]
  %v28 = vld [vmem:[%s0 + $0x40] sm:$0xff]
  %v29 = vld [vmem:[%s0 + $0x48] sm:$0xff]
  %v30 = vld [vmem:[%s0 + $0x50] sm:$0xff]
  %v31 = vld [vmem:[%s0 + $0x58] sm:$0xff]
  %v32 = vld [vmem:[%s0 + $0x60] sm:$0xff]
  %v33 = vld [vmem:[%s0 + $0x68] sm:$0xff]
  %v34 = vld [vmem:[%s0 + $0x70] sm:$0xff]
  %v35 = vld [vmem:[%s0 + $0x78] sm:$0xff]
  %v36 = vld [vmem:[%s0 + $0x80] sm:$0xff]
  %v37 = vld [vmem:[%s0 + $0x88] sm:$0xff]
  %v38 = vld [vmem:[%s0 + $0x90] sm:$0xff]
  %v39 = vld [vmem:[%s0 + $0x98] sm:$0xff]
  %v40 = vld [vmem:[%s0 + $0xa0] sm:$0xff]
  %v41 = vld [vmem:[%s0 + $0xa8] sm:$0xff]
  %v42 = vld [vmem:[%s0 + $0xb0] sm:$0xff]
  %v43 = vld [vmem:[%s0 + $0xb8] sm:$0xff]
  %v44 = vld [vmem:[%s0 + $0xc0] sm:$0xff]
  %v45 = vld [vmem:[%s0 + $0xc8] sm:$0xff]
  %v46 = vld [vmem:[%s0 + $0xd0] sm:$0xff]
  %v47 = vld [vmem:[%s0 + $0xd8] sm:$0xff]
  %v48 = vld [vmem:[%s0 + $0xe0] sm:$0xff]
  %v49 = vld [vmem:[%s0 + $0xe8] sm:$0xff]
  %v50 = vld [vmem:[%s0 + $0xf0] sm:$0xff]
  %v51 = vld [vmem:[%s0 + $0xf8] sm:$0xff]
  %v52 = vld [vmem:[%s0 + $0x100] sm:$0xff]
  %v53 = vld [vmem:[%s0 + $0x108] sm:$0xff]
  %v54 = vld [vmem:[%s0 + $0x110] sm:$0xff]
  %v55 = vld [vmem:[%s0 + $0x118] sm:$0xff]
  %v56 = vld [vmem:[%s0 + $0x120] sm:$0xff]
  %v57 = vld [vmem:[%s0 + $0x128] sm:$0xff]
  %v58 = vld [vmem:[%s0 + $0x130] sm:$0xff]
  %v59 = vld [vmem:[%s0 + $0x138] sm:$0xff]
  %v60 = vld [vmem:[%s0 + $0x140] sm:$0xff]
  %v61 = vld [vmem:[%s0 + $0x148] sm:$0xff]
  %v62 = vld [vmem:[%s0 + $0x150] sm:$0xff]
  %v63 = vld [vmem:[%s0 + $0x158] sm:$0xff]
  %v64 = vld [vmem:[%s0 + $0x160] sm:$0xff]
  %v65 = vld [vmem:[%s0 + $0x168] sm:$0xff]
  %v66 = vld [vmem:[%s0 + $0x170] sm:$0xff]
  %v67 = vld [vmem:[%s0 + $0x178] sm:$0xff]
  %v68 = vld [vmem:[%s0 + $0x180] sm:$0xff]
  %v69 = vld [vmem:[%s0 + $0x188] sm:$0xff]
  %v70 = vld [vmem:[%s0 + $0x190] sm:$0xff]
  %v71 = vld [vmem:[%s0 + $0x198] sm:$0xff]
  %v72 = vld [vmem:[%s0 + $0x1a0] sm:$0xff]
  %v73 = vld [vmem:[%s0 + $0x1a8] sm:$0xff]
  %v74 = vld [vmem:[%s0 + $0x1b0] sm:$0xff]
  %v75 = vld [vmem:[%s0 + $0x1b8] sm:$0xff]
  %v76 = vld [vmem:[%s0 + $0x1c0] sm:$0xff]
  %v77 = vld [vmem:[%s0 + $0x1c8] sm:$0xff]
  %v78 = vld [vmem:[%s0 + $0x1d0] sm:$0xff]
  %v79 = vld [vmem:[%s0 + $0x1d8] sm:$0xff]
  %v80 = vld [vmem:[%s0 + $0x1e0] sm:$0xff]
  %v81 = vld [vmem:[%s0 + $0x1e8] sm:$0xff]
  %v82 = vld [vmem:[%s0 + $0x1f0] sm:$0xff]
  %v83 = vld [vmem:[%s0 + $0x1f8] sm:$0xff]
  %v84 = vld [vmem:[%s1] sm:$0xf]
  %v85 = vld [vmem:[%s2] sm:$0x1]
  %v87 = vlaneseq
  %v88 = vshrl.u32 %v87, 7
  %v89 = vsub.s32 0, %v88
  %v90 = vrot.slane %v85, %v89
  %vm92 = vcmask 31744
  %v94 = vsel %vm92, %v20, 0
  %v97 = vsel %vm92, %v21, 0
  %v100 = vsel %vm92, %v22, 0
  %v103 = vsel %vm92, %v23, 0
  %v106 = vsel %vm92, %v24, 0
  %v109 = vsel %vm92, %v25, 0
  %v112 = vsel %vm92, %v26, 0
  %v115 = vsel %vm92, %v27, 0
  %v118 = vsel %vm92, %v28, 0
  %v121 = vsel %vm92, %v29, 0
  %v124 = vsel %vm92, %v30, 0
  %v127 = vsel %vm92, %v31, 0
  %v130 = vsel %vm92, %v32, 0
  %v133 = vsel %vm92, %v33, 0
  %v136 = vsel %vm92, %v34, 0
  %v139 = vsel %vm92, %v35, 0
  %v142 = vsel %vm92, %v36, 0
  %v145 = vsel %vm92, %v37, 0
  %v148 = vsel %vm92, %v38, 0
  %v151 = vsel %vm92, %v39, 0
  %v154 = vsel %vm92, %v40, 0
  %v157 = vsel %vm92, %v41, 0
  %v160 = vsel %vm92, %v42, 0
  %v163 = vsel %vm92, %v43, 0
  %v166 = vsel %vm92, %v44, 0
  %v169 = vsel %vm92, %v45, 0
  %v172 = vsel %vm92, %v46, 0
  %v175 = vsel %vm92, %v47, 0
  %v178 = vsel %vm92, %v48, 0
  %v181 = vsel %vm92, %v49, 0
  %v184 = vsel %vm92, %v50, 0
  %v187 = vsel %vm92, %v51, 0
  %v190 = vsel %vm92, %v52, 0
  %v193 = vsel %vm92, %v53, 0
  %v196 = vsel %vm92, %v54, 0
  %v199 = vsel %vm92, %v55, 0
  %v202 = vsel %vm92, %v56, 0
  %v205 = vsel %vm92, %v57, 0
  %v208 = vsel %vm92, %v58, 0
  %v211 = vsel %vm92, %v59, 0
  %v214 = vsel %vm92, %v60, 0
  %v217 = vsel %vm92, %v61, 0
  %v220 = vsel %vm92, %v62, 0
  %v223 = vsel %vm92, %v63, 0
  %v226 = vsel %vm92, %v64, 0
  %v229 = vsel %vm92, %v65, 0
  %v232 = vsel %vm92, %v66, 0
  %v235 = vsel %vm92, %v67, 0
  %v238 = vsel %vm92, %v68, 0
  %v241 = vsel %vm92, %v69, 0
  %v244 = vsel %vm92, %v70, 0
  %v247 = vsel %vm92, %v71, 0
  %v250 = vsel %vm92, %v72, 0
  %v253 = vsel %vm92, %v73, 0
  %v256 = vsel %vm92, %v74, 0
  %v259 = vsel %vm92, %v75, 0
  %v262 = vsel %vm92, %v76, 0
  %v265 = vsel %vm92, %v77, 0
  %v268 = vsel %vm92, %v78, 0
  %v271 = vsel %vm92, %v79, 0
  %v274 = vsel %vm92, %v80, 0
  %v277 = vsel %vm92, %v81, 0
  %v280 = vsel %vm92, %v82, 0
  %v283 = vsel %vm92, %v83, 0
  %vm285 = vcmask 1043456
  %v287 = vsel %vm285, %v84, 0
  %289 = vmatprep.subr.mxu0 0.0
  %290 = vmatpush1.msra.mxu0 %v287
  %291 = vmatprep.subr.mxu0 0.0
  %292 = vmatpush1.msra.mxu0 0.0
  %293 = vmatprep.subr.mxu0 0.0
  %294 = vmatpush1.msra.mxu0 0.0
  %295 = vmatprep.subr.mxu0 0.0
  %296 = vmatpush1.msra.mxu0 0.0
  %297 = vmatprep.subr.mxu0 0.0
  %298 = vmatpush1.msra.mxu0 0.0
  %299 = vmatprep.subr.mxu0 0.0
  %300 = vmatpush1.msra.mxu0 0.0
  %301 = vmatprep.subr.mxu0 0.0
  %302 = vmatpush1.msra.mxu0 0.0
  %303 = vmatprep.subr.mxu0 0.0
  %304 = vmatpush1.msra.mxu0 0.0
  %305 = vmatprep.subr.mxu0 0.0
  %306 = vmatpush1.msra.mxu0 0.0
  %307 = vmatprep.subr.mxu0 0.0
  %308 = vmatpush1.msra.mxu0 0.0
  %309 = vmatprep.subr.mxu0 0.0
  %310 = vmatpush1.msra.mxu0 0.0
  %311 = vmatprep.subr.mxu0 0.0
  %312 = vmatpush1.msra.mxu0 0.0
  %313 = vmatprep.subr.mxu0 0.0
  %314 = vmatpush1.msra.mxu0 0.0
  %315 = vmatprep.subr.mxu0 0.0
  %316 = vmatpush1.msra.mxu0 0.0
  %317 = vmatprep.subr.mxu0 0.0
  %318 = vmatpush1.msra.mxu0 0.0
  %319 = vmatprep.subr.mxu0 0.0
  %320 = vmatpush1.msra.mxu0 0.0
  %321 = vmatprep.subr.mxu0 0.0
  %322 = vmatpush1.msra.mxu0 0.0
  %323 = vmatprep.subr.mxu0 0.0
  %324 = vmatpush1.msra.mxu0 0.0
  %325 = vmatprep.subr.mxu0 0.0
  %326 = vmatpush1.msra.mxu0 0.0
  %327 = vmatprep.subr.mxu0 0.0
  %328 = vmatpush1.msra.mxu0 0.0
  %329 = vmatprep.subr.mxu0 0.0
  %330 = vmatpush1.msra.mxu0 0.0
  %331 = vmatprep.subr.mxu0 0.0
  %332 = vmatpush1.msra.mxu0 0.0
  %333 = vmatprep.subr.mxu0 0.0
  %334 = vmatpush1.msra.mxu0 0.0
  %335 = vmatprep.subr.mxu0 0.0
  %336 = vmatpush1.msra.mxu0 0.0
  %337 = vmatprep.subr.mxu0 0.0
  %338 = vmatpush1.msra.mxu0 0.0
  %339 = vmatprep.subr.mxu0 0.0
  %340 = vmatpush1.msra.mxu0 0.0
  %341 = vmatprep.subr.mxu0 0.0
  %342 = vmatpush1.msra.mxu0 0.0
  %343 = vmatprep.subr.mxu0 0.0
  %344 = vmatpush1.msra.mxu0 0.0
  %345 = vmatprep.subr.mxu0 0.0
  %346 = vmatpush1.msra.mxu0 0.0
  %347 = vmatprep.subr.mxu0 0.0
  %348 = vmatpush1.msra.mxu0 0.0
  %349 = vmatprep.subr.mxu0 0.0
  %350 = vmatpush1.msra.mxu0 0.0
  %351 = vmatprep.subr.mxu0 0.0
  %352 = vmatpush1.msra.mxu0 0.0
  %353 = vmatprep.mubr.f32.mxu0 0.0
  %354 = vmatmul.mubr.f32.gmra.mrb[0].mxu0 %v94
  %v355 = vpop.f32.mrb[0].mxu0
  %v356 = vadd.f32 %v90, %v355
  %v357 = vpop.f32.mrb[0].mxu0
  %358 = vmatprep.mubr.f32.mxu0 0.0
  %359 = vmatmul.mubr.f32.gmra.mrb[0].mxu0 %v97
  %v360 = vpop.f32.mrb[0].mxu0
  %v361 = vadd.f32 %v90, %v360
  %v362 = vpop.f32.mrb[0].mxu0
  %363 = vmatprep.mubr.f32.mxu0 0.0
  %364 = vmatmul.mubr.f32.gmra.mrb[0].mxu0 %v100
  %v365 = vpop.f32.mrb[0].mxu0
  %v366 = vadd.f32 %v90, %v365
  %v367 = vpop.f32.mrb[0].mxu0
  %368 = vmatprep.mubr.f32.mxu0 0.0
  %369 = vmatmul.mubr.f32.gmra.mrb[0].mxu0 %v103
  %v370 = vpop.f32.mrb[0].mxu0
  %v371 = vadd.f32 %v90, %v370
  %v372 = vpop.f32.mrb[0].mxu0
  %373 = vmatprep.mubr.f32.mxu0 0.0
  %374 = vmatmul.mubr.f32.gmra.mrb[0].mxu0 %v106
  %v375 = vpop.f32.mrb[0].mxu0
  %v376 = vadd.f32 %v90, %v375
  %v377 = vpop.f32.mrb[0].mxu0
  %378 = vmatprep.mubr.f32.mxu0 0.0
  %379 = vmatmul.mubr.f32.gmra.mrb[0].mxu0 %v109
  %v380 = vpop.f32.mrb[0].mxu0
  %v381 = vadd.f32 %v90, %v380
  %v382 = vpop.f32.mrb[0].mxu0
  %383 = vmatprep.mubr.f32.mxu0 0.0
  %384 = vmatmul.mubr.f32.gmra.mrb[0].mxu0 %v112
  %v385 = vpop.f32.mrb[0].mxu0
  %v386 = vadd.f32 %v90, %v385
  %v387 = vpop.f32.mrb[0].mxu0
  %388 = vmatprep.mubr.f32.mxu0 0.0
  %389 = vmatmul.mubr.f32.gmra.mrb[0].mxu0 %v115
  %v390 = vpop.f32.mrb[0].mxu0
  %v391 = vadd.f32 %v90, %v390
  %v392 = vpop.f32.mrb[0].mxu0
  %393 = vmatprep.mubr.f32.mxu0 0.0
  %394 = vmatmul.mubr.f32.gmra.mrb[0].mxu0 %v118
  %v395 = vpop.f32.mrb[0].mxu0
  %v396 = vadd.f32 %v90, %v395
  %v397 = vpop.f32.mrb[0].mxu0
  %398 = vmatprep.mubr.f32.mxu0 0.0
  %399 = vmatmul.mubr.f32.gmra.mrb[0].mxu0 %v121
  %v400 = vpop.f32.mrb[0].mxu0
  %v401 = vadd.f32 %v90, %v400
  %v402 = vpop.f32.mrb[0].mxu0
  %403 = vmatprep.mubr.f32.mxu0 0.0
  %404 = vmatmul.mubr.f32.gmra.mrb[0].mxu0 %v124
  %v405 = vpop.f32.mrb[0].mxu0
  %v406 = vadd.f32 %v90, %v405
  %v407 = vpop.f32.mrb[0].mxu0
  %408 = vmatprep.mubr.f32.mxu0 0.0
  %409 = vmatmul.mubr.f32.gmra.mrb[0].mxu0 %v127
  %v410 = vpop.f32.mrb[0].mxu0
  %v411 = vadd.f32 %v90, %v410
  %v412 = vpop.f32.mrb[0].mxu0
  %413 = vmatprep.mubr.f32.mxu0 0.0
  %414 = vmatmul.mubr.f32.gmra.mrb[0].mxu0 %v130
  %v415 = vpop.f32.mrb[0].mxu0
  %v416 = vadd.f32 %v90, %v415
  %v417 = vpop.f32.mrb[0].mxu0
  %418 = vmatprep.mubr.f32.mxu0 0.0
  %419 = vmatmul.mubr.f32.gmra.mrb[0].mxu0 %v133
  %v420 = vpop.f32.mrb[0].mxu0
  %v421 = vadd.f32 %v90, %v420
  %v422 = vpop.f32.mrb[0].mxu0
  %423 = vmatprep.mubr.f32.mxu0 0.0
  %424 = vmatmul.mubr.f32.gmra.mrb[0].mxu0 %v136
  %v425 = vpop.f32.mrb[0].mxu0
  %v426 = vadd.f32 %v90, %v425
  %v427 = vpop.f32.mrb[0].mxu0
  %428 = vmatprep.mubr.f32.mxu0 0.0
  %429 = vmatmul.mubr.f32.gmra.mrb[0].mxu0 %v139
  %v430 = vpop.f32.mrb[0].mxu0
  %v431 = vadd.f32 %v90, %v430
  %v432 = vpop.f32.mrb[0].mxu0
  %433 = vmatprep.mubr.f32.mxu0 0.0
  %434 = vmatmul.mubr.f32.gmra.mrb[0].mxu0 %v142
  %v435 = vpop.f32.mrb[0].mxu0
  %v436 = vadd.f32 %v90, %v435
  %v437 = vpop.f32.mrb[0].mxu0
  %438 = vmatprep.mubr.f32.mxu0 0.0
  %439 = vmatmul.mubr.f32.gmra.mrb[0].mxu0 %v145
  %v440 = vpop.f32.mrb[0].mxu0
  %v441 = vadd.f32 %v90, %v440
  %v442 = vpop.f32.mrb[0].mxu0
  %443 = vmatprep.mubr.f32.mxu0 0.0
  %444 = vmatmul.mubr.f32.gmra.mrb[0].mxu0 %v148
  %v445 = vpop.f32.mrb[0].mxu0
  %v446 = vadd.f32 %v90, %v445
  %v447 = vpop.f32.mrb[0].mxu0
  %448 = vmatprep.mubr.f32.mxu0 0.0
  %449 = vmatmul.mubr.f32.gmra.mrb[0].mxu0 %v151
  %v450 = vpop.f32.mrb[0].mxu0
  %v451 = vadd.f32 %v90, %v450
  %v452 = vpop.f32.mrb[0].mxu0
  %453 = vmatprep.mubr.f32.mxu0 0.0
  %454 = vmatmul.mubr.f32.gmra.mrb[0].mxu0 %v154
  %v455 = vpop.f32.mrb[0].mxu0
  %v456 = vadd.f32 %v90, %v455
  %v457 = vpop.f32.mrb[0].mxu0
  %458 = vmatprep.mubr.f32.mxu0 0.0
  %459 = vmatmul.mubr.f32.gmra.mrb[0].mxu0 %v157
  %v460 = vpop.f32.mrb[0].mxu0
  %v461 = vadd.f32 %v90, %v460
  %v462 = vpop.f32.mrb[0].mxu0
  %463 = vmatprep.mubr.f32.mxu0 0.0
  %464 = vmatmul.mubr.f32.gmra.mrb[0].mxu0 %v160
  %v465 = vpop.f32.mrb[0].mxu0
  %v466 = vadd.f32 %v90, %v465
  %v467 = vpop.f32.mrb[0].mxu0
  %468 = vmatprep.mubr.f32.mxu0 0.0
  %469 = vmatmul.mubr.f32.gmra.mrb[0].mxu0 %v163
  %v470 = vpop.f32.mrb[0].mxu0
  %v471 = vadd.f32 %v90, %v470
  %v472 = vpop.f32.mrb[0].mxu0
  %473 = vmatprep.mubr.f32.mxu0 0.0
  %474 = vmatmul.mubr.f32.gmra.mrb[0].mxu0 %v166
  %v475 = vpop.f32.mrb[0].mxu0
  %v476 = vadd.f32 %v90, %v475
  %v477 = vpop.f32.mrb[0].mxu0
  %478 = vmatprep.mubr.f32.mxu0 0.0
  %479 = vmatmul.mubr.f32.gmra.mrb[0].mxu0 %v169
  %v480 = vpop.f32.mrb[0].mxu0
  %v481 = vadd.f32 %v90, %v480
  %v482 = vpop.f32.mrb[0].mxu0
  %483 = vmatprep.mubr.f32.mxu0 0.0
  %484 = vmatmul.mubr.f32.gmra.mrb[0].mxu0 %v172
  %v485 = vpop.f32.mrb[0].mxu0
  %v486 = vadd.f32 %v90, %v485
  %v487 = vpop.f32.mrb[0].mxu0
  %488 = vmatprep.mubr.f32.mxu0 0.0
  %489 = vmatmul.mubr.f32.gmra.mrb[0].mxu0 %v175
  %v490 = vpop.f32.mrb[0].mxu0
  %v491 = vadd.f32 %v90, %v490
  %v492 = vpop.f32.mrb[0].mxu0
  %493 = vmatprep.mubr.f32.mxu0 0.0
  %494 = vmatmul.mubr.f32.gmra.mrb[0].mxu0 %v178
  %v495 = vpop.f32.mrb[0].mxu0
  %v496 = vadd.f32 %v90, %v495
  %v497 = vpop.f32.mrb[0].mxu0
  %498 = vmatprep.mubr.f32.mxu0 0.0
  %499 = vmatmul.mubr.f32.gmra.mrb[0].mxu0 %v181
  %v500 = vpop.f32.mrb[0].mxu0
  %v501 = vadd.f32 %v90, %v500
  %v502 = vpop.f32.mrb[0].mxu0
  %503 = vmatprep.mubr.f32.mxu0 0.0
  %504 = vmatmul.mubr.f32.gmra.mrb[0].mxu0 %v184
  %v505 = vpop.f32.mrb[0].mxu0
  %v506 = vadd.f32 %v90, %v505
  %v507 = vpop.f32.mrb[0].mxu0
  %508 = vmatprep.mubr.f32.mxu0 0.0
  %509 = vmatmul.mubr.f32.gmra.mrb[0].mxu0 %v187
  %v510 = vpop.f32.mrb[0].mxu0
  %v511 = vadd.f32 %v90, %v510
  %v512 = vpop.f32.mrb[0].mxu0
  %513 = vmatprep.mubr.f32.mxu0 0.0
  %514 = vmatmul.mubr.f32.gmra.mrb[0].mxu0 %v190
  %v515 = vpop.f32.mrb[0].mxu0
  %v516 = vadd.f32 %v90, %v515
  %v517 = vpop.f32.mrb[0].mxu0
  %518 = vmatprep.mubr.f32.mxu0 0.0
  %519 = vmatmul.mubr.f32.gmra.mrb[0].mxu0 %v193
  %v520 = vpop.f32.mrb[0].mxu0
  %v521 = vadd.f32 %v90, %v520
  %v522 = vpop.f32.mrb[0].mxu0
  %523 = vmatprep.mubr.f32.mxu0 0.0
  %524 = vmatmul.mubr.f32.gmra.mrb[0].mxu0 %v196
  %v525 = vpop.f32.mrb[0].mxu0
  %v526 = vadd.f32 %v90, %v525
  %v527 = vpop.f32.mrb[0].mxu0
  %528 = vmatprep.mubr.f32.mxu0 0.0
  %529 = vmatmul.mubr.f32.gmra.mrb[0].mxu0 %v199
  %v530 = vpop.f32.mrb[0].mxu0
  %v531 = vadd.f32 %v90, %v530
  %v532 = vpop.f32.mrb[0].mxu0
  %533 = vmatprep.mubr.f32.mxu0 0.0
  %534 = vmatmul.mubr.f32.gmra.mrb[0].mxu0 %v202
  %v535 = vpop.f32.mrb[0].mxu0
  %v536 = vadd.f32 %v90, %v535
  %v537 = vpop.f32.mrb[0].mxu0
  %538 = vmatprep.mubr.f32.mxu0 0.0
  %539 = vmatmul.mubr.f32.gmra.mrb[0].mxu0 %v205
  %v540 = vpop.f32.mrb[0].mxu0
  %v541 = vadd.f32 %v90, %v540
  %v542 = vpop.f32.mrb[0].mxu0
  %543 = vmatprep.mubr.f32.mxu0 0.0
  %544 = vmatmul.mubr.f32.gmra.mrb[0].mxu0 %v208
  %v545 = vpop.f32.mrb[0].mxu0
  %v546 = vadd.f32 %v90, %v545
  %v547 = vpop.f32.mrb[0].mxu0
  %548 = vmatprep.mubr.f32.mxu0 0.0
  %549 = vmatmul.mubr.f32.gmra.mrb[0].mxu0 %v211
  %v550 = vpop.f32.mrb[0].mxu0
  %v551 = vadd.f32 %v90, %v550
  %v552 = vpop.f32.mrb[0].mxu0
  %553 = vmatprep.mubr.f32.mxu0 0.0
  %554 = vmatmul.mubr.f32.gmra.mrb[0].mxu0 %v214
  %v555 = vpop.f32.mrb[0].mxu0
  %v556 = vadd.f32 %v90, %v555
  %v557 = vpop.f32.mrb[0].mxu0
  %558 = vmatprep.mubr.f32.mxu0 0.0
  %559 = vmatmul.mubr.f32.gmra.mrb[0].mxu0 %v217
  %v560 = vpop.f32.mrb[0].mxu0
  %v561 = vadd.f32 %v90, %v560
  %v562 = vpop.f32.mrb[0].mxu0
  %563 = vmatprep.mubr.f32.mxu0 0.0
  %564 = vmatmul.mubr.f32.gmra.mrb[0].mxu0 %v220
  %v565 = vpop.f32.mrb[0].mxu0
  %v566 = vadd.f32 %v90, %v565
  %v567 = vpop.f32.mrb[0].mxu0
  %568 = vmatprep.mubr.f32.mxu0 0.0
  %569 = vmatmul.mubr.f32.gmra.mrb[0].mxu0 %v223
  %v570 = vpop.f32.mrb[0].mxu0
  %v571 = vadd.f32 %v90, %v570
  %v572 = vpop.f32.mrb[0].mxu0
  %573 = vmatprep.mubr.f32.mxu0 0.0
  %574 = vmatmul.mubr.f32.gmra.mrb[0].mxu0 %v226
  %v575 = vpop.f32.mrb[0].mxu0
  %v576 = vadd.f32 %v90, %v575
  %v577 = vpop.f32.mrb[0].mxu0
  %578 = vmatprep.mubr.f32.mxu0 0.0
  %579 = vmatmul.mubr.f32.gmra.mrb[0].mxu0 %v229
  %v580 = vpop.f32.mrb[0].mxu0
  %v581 = vadd.f32 %v90, %v580
  %v582 = vpop.f32.mrb[0].mxu0
  %583 = vmatprep.mubr.f32.mxu0 0.0
  %584 = vmatmul.mubr.f32.gmra.mrb[0].mxu0 %v232
  %v585 = vpop.f32.mrb[0].mxu0
  %v586 = vadd.f32 %v90, %v585
  %v587 = vpop.f32.mrb[0].mxu0
  %588 = vmatprep.mubr.f32.mxu0 0.0
  %589 = vmatmul.mubr.f32.gmra.mrb[0].mxu0 %v235
  %v590 = vpop.f32.mrb[0].mxu0
  %v591 = vadd.f32 %v90, %v590
  %v592 = vpop.f32.mrb[0].mxu0
  %593 = vmatprep.mubr.f32.mxu0 0.0
  %594 = vmatmul.mubr.f32.gmra.mrb[0].mxu0 %v238
  %v595 = vpop.f32.mrb[0].mxu0
  %v596 = vadd.f32 %v90, %v595
  %v597 = vpop.f32.mrb[0].mxu0
  %598 = vmatprep.mubr.f32.mxu0 0.0
  %599 = vmatmul.mubr.f32.gmra.mrb[0].mxu0 %v241
  %v600 = vpop.f32.mrb[0].mxu0
  %v601 = vadd.f32 %v90, %v600
  %v602 = vpop.f32.mrb[0].mxu0
  %603 = vmatprep.mubr.f32.mxu0 0.0
  %604 = vmatmul.mubr.f32.gmra.mrb[0].mxu0 %v244
  %v605 = vpop.f32.mrb[0].mxu0
  %v606 = vadd.f32 %v90, %v605
  %v607 = vpop.f32.mrb[0].mxu0
  %608 = vmatprep.mubr.f32.mxu0 0.0
  %609 = vmatmul.mubr.f32.gmra.mrb[0].mxu0 %v247
  %v610 = vpop.f32.mrb[0].mxu0
  %v611 = vadd.f32 %v90, %v610
  %v612 = vpop.f32.mrb[0].mxu0
  %613 = vmatprep.mubr.f32.mxu0 0.0
  %614 = vmatmul.mubr.f32.gmra.mrb[0].mxu0 %v250
  %v615 = vpop.f32.mrb[0].mxu0
  %v616 = vadd.f32 %v90, %v615
  %v617 = vpop.f32.mrb[0].mxu0
  %618 = vmatprep.mubr.f32.mxu0 0.0
  %619 = vmatmul.mubr.f32.gmra.mrb[0].mxu0 %v253
  %v620 = vpop.f32.mrb[0].mxu0
  %v621 = vadd.f32 %v90, %v620
  %v622 = vpop.f32.mrb[0].mxu0
  %623 = vmatprep.mubr.f32.mxu0 0.0
  %624 = vmatmul.mubr.f32.gmra.mrb[0].mxu0 %v256
  %v625 = vpop.f32.mrb[0].mxu0
  %v626 = vadd.f32 %v90, %v625
  %v627 = vpop.f32.mrb[0].mxu0
  %628 = vmatprep.mubr.f32.mxu0 0.0
  %629 = vmatmul.mubr.f32.gmra.mrb[0].mxu0 %v259
  %v630 = vpop.f32.mrb[0].mxu0
  %v631 = vadd.f32 %v90, %v630
  %v632 = vpop.f32.mrb[0].mxu0
  %633 = vmatprep.mubr.f32.mxu0 0.0
  %634 = vmatmul.mubr.f32.gmra.mrb[0].mxu0 %v262
  %v635 = vpop.f32.mrb[0].mxu0
  %v636 = vadd.f32 %v90, %v635
  %v637 = vpop.f32.mrb[0].mxu0
  %638 = vmatprep.mubr.f32.mxu0 0.0
  %639 = vmatmul.mubr.f32.gmra.mrb[0].mxu0 %v265
  %v640 = vpop.f32.mrb[0].mxu0
  %v641 = vadd.f32 %v90, %v640
  %v642 = vpop.f32.mrb[0].mxu0
  %643 = vmatprep.mubr.f32.mxu0 0.0
  %644 = vmatmul.mubr.f32.gmra.mrb[0].mxu0 %v268
  %v645 = vpop.f32.mrb[0].mxu0
  %v646 = vadd.f32 %v90, %v645
  %v647 = vpop.f32.mrb[0].mxu0
  %648 = vmatprep.mubr.f32.mxu0 0.0
  %649 = vmatmul.mubr.f32.gmra.mrb[0].mxu0 %v271
  %v650 = vpop.f32.mrb[0].mxu0
  %v651 = vadd.f32 %v90, %v650
  %v652 = vpop.f32.mrb[0].mxu0
  %653 = vmatprep.mubr.f32.mxu0 0.0
  %654 = vmatmul.mubr.f32.gmra.mrb[0].mxu0 %v274
  %v655 = vpop.f32.mrb[0].mxu0
  %v656 = vadd.f32 %v90, %v655
  %v657 = vpop.f32.mrb[0].mxu0
  %658 = vmatprep.mubr.f32.mxu0 0.0
  %659 = vmatmul.mubr.f32.gmra.mrb[0].mxu0 %v277
  %v660 = vpop.f32.mrb[0].mxu0
  %v661 = vadd.f32 %v90, %v660
  %v662 = vpop.f32.mrb[0].mxu0
  %663 = vmatprep.mubr.f32.mxu0 0.0
  %664 = vmatmul.mubr.f32.gmra.mrb[0].mxu0 %v280
  %v665 = vpop.f32.mrb[0].mxu0
  %v666 = vadd.f32 %v90, %v665
  %v667 = vpop.f32.mrb[0].mxu0
  %668 = vmatprep.mubr.f32.mxu0 0.0
  %669 = vmatmul.mubr.f32.gmra.mrb[0].mxu0 %v283
  %v670 = vpop.f32.mrb[0].mxu0
  %v671 = vadd.f32 %v90, %v670
  %v672 = vpop.f32.mrb[0].mxu0
  %673 = vdwg.mxu0
  %v674 = vld [vmem:[%s3] sm:$0x1]
  %v676 = vlaneseq
  %v677 = vshrl.u32 %v676, 7
  %v678 = vsub.s32 0, %v677
  %v679 = vrot.slane %v674, %v678
  %v681 = vmul.f32 %v356, %v679
  %v682 = vmul.f32 %v361, %v679
  %v683 = vmul.f32 %v366, %v679
  %v684 = vmul.f32 %v371, %v679
  %v685 = vmul.f32 %v376, %v679
  %v686 = vmul.f32 %v381, %v679
  %v687 = vmul.f32 %v386, %v679
  %v688 = vmul.f32 %v391, %v679
  %v689 = vmul.f32 %v396, %v679
  %v690 = vmul.f32 %v401, %v679
  %v691 = vmul.f32 %v406, %v679
  %v692 = vmul.f32 %v411, %v679
  %v693 = vmul.f32 %v416, %v679
  %v694 = vmul.f32 %v421, %v679
  %v695 = vmul.f32 %v426, %v679
  %v696 = vmul.f32 %v431, %v679
  %v697 = vmul.f32 %v436, %v679
  %v698 = vmul.f32 %v441, %v679
  %v699 = vmul.f32 %v446, %v679
  %v700 = vmul.f32 %v451, %v679
  %v701 = vmul.f32 %v456, %v679
  %v702 = vmul.f32 %v461, %v679
  %v703 = vmul.f32 %v466, %v679
  %v704 = vmul.f32 %v471, %v679
  %v705 = vmul.f32 %v476, %v679
  %v706 = vmul.f32 %v481, %v679
  %v707 = vmul.f32 %v486, %v679
  %v708 = vmul.f32 %v491, %v679
  %v709 = vmul.f32 %v496, %v679
  %v710 = vmul.f32 %v501, %v679
  %v711 = vmul.f32 %v506, %v679
  %v712 = vmul.f32 %v511, %v679
  %v713 = vmul.f32 %v516, %v679
  %v714 = vmul.f32 %v521, %v679
  %v715 = vmul.f32 %v526, %v679
  %v716 = vmul.f32 %v531, %v679
  %v717 = vmul.f32 %v536, %v679
  %v718 = vmul.f32 %v541, %v679
  %v719 = vmul.f32 %v546, %v679
  %v720 = vmul.f32 %v551, %v679
  %v721 = vmul.f32 %v556, %v679
  %v722 = vmul.f32 %v561, %v679
  %v723 = vmul.f32 %v566, %v679
  %v724 = vmul.f32 %v571, %v679
  %v725 = vmul.f32 %v576, %v679
  %v726 = vmul.f32 %v581, %v679
  %v727 = vmul.f32 %v586, %v679
  %v728 = vmul.f32 %v591, %v679
  %v729 = vmul.f32 %v596, %v679
  %v730 = vmul.f32 %v601, %v679
  %v731 = vmul.f32 %v606, %v679
  %v732 = vmul.f32 %v611, %v679
  %v733 = vmul.f32 %v616, %v679
  %v734 = vmul.f32 %v621, %v679
  %v735 = vmul.f32 %v626, %v679
  %v736 = vmul.f32 %v631, %v679
  %v737 = vmul.f32 %v636, %v679
  %v738 = vmul.f32 %v641, %v679
  %v739 = vmul.f32 %v646, %v679
  %v740 = vmul.f32 %v651, %v679
  %v741 = vmul.f32 %v656, %v679
  %v742 = vmul.f32 %v661, %v679
  %v743 = vmul.f32 %v666, %v679
  %v744 = vmul.f32 %v671, %v679
  %v745 = vld [vmem:[%s4] sm:$0x1]
  %v747 = vlaneseq
  %v748 = vshrl.u32 %v747, 7
  %v749 = vsub.s32 0, %v748
  %v750 = vrot.slane %v745, %v749
  %v752 = vadd.f32 %v681, %v750
  %v753 = vadd.f32 %v682, %v750
  %v754 = vadd.f32 %v683, %v750
  %v755 = vadd.f32 %v684, %v750
  %v756 = vadd.f32 %v685, %v750
  %v757 = vadd.f32 %v686, %v750
  %v758 = vadd.f32 %v687, %v750
  %v759 = vadd.f32 %v688, %v750
  %v760 = vadd.f32 %v689, %v750
  %v761 = vadd.f32 %v690, %v750
  %v762 = vadd.f32 %v691, %v750
  %v763 = vadd.f32 %v692, %v750
  %v764 = vadd.f32 %v693, %v750
  %v765 = vadd.f32 %v694, %v750
  %v766 = vadd.f32 %v695, %v750
  %v767 = vadd.f32 %v696, %v750
  %v768 = vadd.f32 %v697, %v750
  %v769 = vadd.f32 %v698, %v750
  %v770 = vadd.f32 %v699, %v750
  %v771 = vadd.f32 %v700, %v750
  %v772 = vadd.f32 %v701, %v750
  %v773 = vadd.f32 %v702, %v750
  %v774 = vadd.f32 %v703, %v750
  %v775 = vadd.f32 %v704, %v750
  %v776 = vadd.f32 %v705, %v750
  %v777 = vadd.f32 %v706, %v750
  %v778 = vadd.f32 %v707, %v750
  %v779 = vadd.f32 %v708, %v750
  %v780 = vadd.f32 %v709, %v750
  %v781 = vadd.f32 %v710, %v750
  %v782 = vadd.f32 %v711, %v750
  %v783 = vadd.f32 %v712, %v750
  %v784 = vadd.f32 %v713, %v750
  %v785 = vadd.f32 %v714, %v750
  %v786 = vadd.f32 %v715, %v750
  %v787 = vadd.f32 %v716, %v750
  %v788 = vadd.f32 %v717, %v750
  %v789 = vadd.f32 %v718, %v750
  %v790 = vadd.f32 %v719, %v750
  %v791 = vadd.f32 %v720, %v750
  %v792 = vadd.f32 %v721, %v750
  %v793 = vadd.f32 %v722, %v750
  %v794 = vadd.f32 %v723, %v750
  %v795 = vadd.f32 %v724, %v750
  %v796 = vadd.f32 %v725, %v750
  %v797 = vadd.f32 %v726, %v750
  %v798 = vadd.f32 %v727, %v750
  %v799 = vadd.f32 %v728, %v750
  %v800 = vadd.f32 %v729, %v750
  %v801 = vadd.f32 %v730, %v750
  %v802 = vadd.f32 %v731, %v750
  %v803 = vadd.f32 %v732, %v750
  %v804 = vadd.f32 %v733, %v750
  %v805 = vadd.f32 %v734, %v750
  %v806 = vadd.f32 %v735, %v750
  %v807 = vadd.f32 %v736, %v750
  %v808 = vadd.f32 %v737, %v750
  %v809 = vadd.f32 %v738, %v750
  %v810 = vadd.f32 %v739, %v750
  %v811 = vadd.f32 %v740, %v750
  %v812 = vadd.f32 %v741, %v750
  %v813 = vadd.f32 %v742, %v750
  %v814 = vadd.f32 %v743, %v750
  %v815 = vadd.f32 %v744, %v750
  %816 = vst [vmem:[%s5] sm:$0xff] %v752
  %817 = vst [vmem:[%s5 + $0x8] sm:$0xff] %v753
  %818 = vst [vmem:[%s5 + $0x10] sm:$0xff] %v754
  %819 = vst [vmem:[%s5 + $0x18] sm:$0xff] %v755
  %820 = vst [vmem:[%s5 + $0x20] sm:$0xff] %v756
  %821 = vst [vmem:[%s5 + $0x28] sm:$0xff] %v757
  %822 = vst [vmem:[%s5 + $0x30] sm:$0xff] %v758
  %823 = vst [vmem:[%s5 + $0x38] sm:$0xff] %v759
  %824 = vst [vmem:[%s5 + $0x40] sm:$0xff] %v760
  %825 = vst [vmem:[%s5 + $0x48] sm:$0xff] %v761
  %826 = vst [vmem:[%s5 + $0x50] sm:$0xff] %v762
  %827 = vst [vmem:[%s5 + $0x58] sm:$0xff] %v763
  %828 = vst [vmem:[%s5 + $0x60] sm:$0xff] %v764
  %829 = vst [vmem:[%s5 + $0x68] sm:$0xff] %v765
  %830 = vst [vmem:[%s5 + $0x70] sm:$0xff] %v766
  %831 = vst [vmem:[%s5 + $0x78] sm:$0xff] %v767
  %832 = vst [vmem:[%s5 + $0x80] sm:$0xff] %v768
  %833 = vst [vmem:[%s5 + $0x88] sm:$0xff] %v769
  %834 = vst [vmem:[%s5 + $0x90] sm:$0xff] %v770
  %835 = vst [vmem:[%s5 + $0x98] sm:$0xff] %v771
  %836 = vst [vmem:[%s5 + $0xa0] sm:$0xff] %v772
  %837 = vst [vmem:[%s5 + $0xa8] sm:$0xff] %v773
  %838 = vst [vmem:[%s5 + $0xb0] sm:$0xff] %v774
  %839 = vst [vmem:[%s5 + $0xb8] sm:$0xff] %v775
  %840 = vst [vmem:[%s5 + $0xc0] sm:$0xff] %v776
  %841 = vst [vmem:[%s5 + $0xc8] sm:$0xff] %v777
  %842 = vst [vmem:[%s5 + $0xd0] sm:$0xff] %v778
  %843 = vst [vmem:[%s5 + $0xd8] sm:$0xff] %v779
  %844 = vst [vmem:[%s5 + $0xe0] sm:$0xff] %v780
  %845 = vst [vmem:[%s5 + $0xe8] sm:$0xff] %v781
  %846 = vst [vmem:[%s5 + $0xf0] sm:$0xff] %v782
  %847 = vst [vmem:[%s5 + $0xf8] sm:$0xff] %v783
  %848 = vst [vmem:[%s5 + $0x100] sm:$0xff] %v784
  %849 = vst [vmem:[%s5 + $0x108] sm:$0xff] %v785
  %850 = vst [vmem:[%s5 + $0x110] sm:$0xff] %v786
  %851 = vst [vmem:[%s5 + $0x118] sm:$0xff] %v787
  %852 = vst [vmem:[%s5 + $0x120] sm:$0xff] %v788
  %853 = vst [vmem:[%s5 + $0x128] sm:$0xff] %v789
  %854 = vst [vmem:[%s5 + $0x130] sm:$0xff] %v790
  %855 = vst [vmem:[%s5 + $0x138] sm:$0xff] %v791
  %856 = vst [vmem:[%s5 + $0x140] sm:$0xff] %v792
  %857 = vst [vmem:[%s5 + $0x148] sm:$0xff] %v793
  %858 = vst [vmem:[%s5 + $0x150] sm:$0xff] %v794
  %859 = vst [vmem:[%s5 + $0x158] sm:$0xff] %v795
  %860 = vst [vmem:[%s5 + $0x160] sm:$0xff] %v796
  %861 = vst [vmem:[%s5 + $0x168] sm:$0xff] %v797
  %862 = vst [vmem:[%s5 + $0x170] sm:$0xff] %v798
  %863 = vst [vmem:[%s5 + $0x178] sm:$0xff] %v799
  %864 = vst [vmem:[%s5 + $0x180] sm:$0xff] %v800
  %865 = vst [vmem:[%s5 + $0x188] sm:$0xff] %v801
  %866 = vst [vmem:[%s5 + $0x190] sm:$0xff] %v802
  %867 = vst [vmem:[%s5 + $0x198] sm:$0xff] %v803
  %868 = vst [vmem:[%s5 + $0x1a0] sm:$0xff] %v804
  %869 = vst [vmem:[%s5 + $0x1a8] sm:$0xff] %v805
  %870 = vst [vmem:[%s5 + $0x1b0] sm:$0xff] %v806
  %871 = vst [vmem:[%s5 + $0x1b8] sm:$0xff] %v807
  %872 = vst [vmem:[%s5 + $0x1c0] sm:$0xff] %v808
  %873 = vst [vmem:[%s5 + $0x1c8] sm:$0xff] %v809
  %874 = vst [vmem:[%s5 + $0x1d0] sm:$0xff] %v810
  %875 = vst [vmem:[%s5 + $0x1d8] sm:$0xff] %v811
  %876 = vst [vmem:[%s5 + $0x1e0] sm:$0xff] %v812
  %877 = vst [vmem:[%s5 + $0x1e8] sm:$0xff] %v813
  %878 = vst [vmem:[%s5 + $0x1f0] sm:$0xff] %v814
  %879 = vst [vmem:[%s5 + $0x1f8] sm:$0xff] %v815
  // Predicated region
  $region22: #{upsampling_layer_forward.3} parent=0 // pred_check
    _
  $region23: #{upsampling_layer_forward.3} parent=0 // pred_check_branch
    %881 = sbr.rel (0) target = $region25
  $region24: #{upsampling_layer_forward.3} parent=0 // pred_region
    _
  $region25: #{upsampling_layer_forward.3} parent=0 // pred_fallthru
    _
  // Predicated region
  $region26: #{upsampling_layer_forward.3} parent=0 // pred_check
    _
  $region27: #{upsampling_layer_forward.3} parent=0 // pred_check_branch
    %883 = sbr.rel (0) target = $region29
  $region28: #{upsampling_layer_forward.3} parent=0 // pred_region
    _
  $region29: #{upsampling_layer_forward.3} parent=0 // pred_fallthru
    _

</llo_original>
